<compile_context>
chip_gen: v6e
topology: v6e:2x2x1
jax: 0.10.0
libtpu: 0.0.40
codegen_flags: <defaults>
</compile_context>

<pallas_src>
import functools

import jax
import jax.numpy as jnp
import numpy as np
from jax.experimental import pallas as pl
from jax.experimental.pallas import tpu as pltpu


# ---------------------------------------------------------------------------
# Fused kernel: in-VMEM halo conv (3 banded matmuls) + BN shift + ReLU +
#               pool partial + audio MLP + classifier on implicit concat.
# ---------------------------------------------------------------------------
def _avc_fused_kernel(x_ref, wb_ref, shift_ref, audio_ref,
                      aw1_ref, ab1_ref, aw2_ref, ab2_ref,
                      cwv_ref, cwa_ref, cb_ref, o_ref,
                      *, tile_n, h, wcout):
    # x_ref:     (tile_n, H+2, (W+2)*Cin) bf16   padded NHWC video
    # wb_ref:    (3, (W+2)*Cin, W*Cout)   bf16   block-banded conv weights (BN scale folded)
    # shift_ref: (1, W*Cout)              f32    beta + (conv_b - mean)*scale, tiled over W
    # audio_ref: (tile_n, Da)             f32
    # aw1/ab1/aw2/ab2: audio MLP params (weights already (in, out))
    # cwv_ref:   (W*Cout, CLSP)           f32    classifier video half, 1/(H*W) folded, W-tiled
    # cwa_ref:   (Ca, CLSP)               f32    classifier audio half
    # cb_ref:    (1, CLSP)                f32
    # o_ref:     (tile_n, CLSP)           f32
    x = x_ref[...]                                   # (tile_n, H+2, lane) bf16
    lane = x.shape[2]

    # Conv as 3 matmuls over the ky halo; kx shift is encoded in wb's band.
    acc = jnp.zeros((tile_n * h, wcout), jnp.float32)
    for ky in range(3):                              # static unroll, MXU work
        slab = x[:, ky:ky + h, :].reshape(tile_n * h, lane)
        acc = acc + jnp.dot(slab, wb_ref[ky],
                            preferred_element_type=jnp.float32)

    # + conv bias / BN shift, ReLU.
    y = jnp.maximum(acc + shift_ref[...], 0.0)       # (tile_n*H, W*Cout) f32

    # Global avg pool: sum over H here (sublane reduce); the W-sum and the
    # 1/(H*W) are folded into cwv (W-tiled classifier weights).
    vsum = jnp.sum(y.reshape(tile_n, h, wcout), axis=1)   # (tile_n, W*Cout)

    # Audio branch: Linear + ReLU + Linear.
    ha = jnp.maximum(
        jnp.dot(audio_ref[...], aw1_ref[...],
                preferred_element_type=jnp.float32) + ab1_ref[...], 0.0)
    aemb = jnp.dot(ha, aw2_ref[...],
                   preferred_element_type=jnp.float32) + ab2_ref[...]

    # Classifier on implicit concat([video_emb, audio_emb]); lane-dense store.
    o_ref[...] = (jnp.dot(vsum, cwv_ref[...], preferred_element_type=jnp.float32)
                  + jnp.dot(aemb, cwa_ref[...], preferred_element_type=jnp.float32)
                  + cb_ref[...])


# ---------------------------------------------------------------------------
# Full AVCWrappercam.forward
# ---------------------------------------------------------------------------
def avc_wrapper_cam_forward(video_nchw, audio, p, eps=1e-5, tile_n=None):
    N, Cin, H, W = video_nchw.shape
    Cout = p["conv_w"].shape[0]
    Da = audio.shape[1]
    Dh = p["a_w1"].shape[0]
    Ca = p["a_w2"].shape[0]
    num_classes = p["c_w"].shape[0]
    HW = H * W
    lane = (W + 2) * Cin          # merged (col, channel) lane dim of padded video
    wcout = W * Cout              # merged (col, out-channel) lane dim of conv output
    cls_pad = ((num_classes + 127) // 128) * 128   # lane-dense output width

    # Batch tile: capped so (a) the grid has multiple steps at large N
    # (pipelining + v7x 2-TC sharding) and (b) per-step VMEM (~8 MiB at
    # tile_n=128, HW=256) fits v5e's 16 MiB scoped default and v7x's 64 MiB.
    if tile_n is None:
        if N <= 128:
            tile_n = N
        else:
            tile_n = max((t for t in (128, 64, 32, 16, 8) if N % t == 0),
                         default=N)
    if tile_n < N:
        assert N % tile_n == 0 and tile_n % 8 == 0, (N, tile_n)

    # --- input layout plumbing (1x video bytes; no 9x im2col in HBM) -------
    x = jnp.transpose(video_nchw, (0, 2, 3, 1))                  # NCHW -> NHWC
    x = jnp.pad(x, ((0, 0), (1, 1), (1, 1), (0, 0)))             # pad=1
    x = x.reshape(N, H + 2, lane).astype(jnp.bfloat16)
    audio = audio.astype(jnp.float32)

    # --- parameter folding --------------------------------------------------
    inv_std = 1.0 / jnp.sqrt(p["bn_var"] + eps)
    scale = p["bn_gamma"] * inv_std                              # (Cout,)
    w_scaled = p["conv_w"] * scale[:, None, None, None]          # fold BN scale
    w_k = jnp.transpose(w_scaled, (2, 3, 1, 0))                  # (ky, kx, ci, co)

    # Block-banded weights: wb[ky, jr*Cin+ci, j*Cout+co] = w[ky, jr-j, ci, co]
    # for 0 <= jr-j <= 2, else 0.  Encodes the kx shift so the kernel never
    # needs a lane-splitting im2col reshape.
    jr = np.arange(W + 2)[None, :, None]
    jj = np.arange(W)[None, None, :]
    kx = np.arange(3)[:, None, None]
    sel = jnp.asarray((jr - jj == kx).astype(np.float32))        # (3, W+2, W)
    wb = jnp.einsum('xrj,yxio->yrijo', sel, w_k)                 # (ky, jr, ci, j, co)
    wb = wb.reshape(3, lane, wcout).astype(jnp.bfloat16)

    shift = p["bn_beta"] + (p["conv_b"] - p["bn_mean"]) * scale  # (Cout,)
    shift_t = jnp.tile(shift, W).reshape(1, wcout).astype(jnp.float32)

    aw1 = p["a_w1"].T.astype(jnp.float32)                        # (Da, Dh)
    ab1 = p["a_b1"].reshape(1, Dh).astype(jnp.float32)
    aw2 = p["a_w2"].T.astype(jnp.float32)                        # (Dh, Ca)
    ab2 = p["a_b2"].reshape(1, Ca).astype(jnp.float32)

    # Split classifier (implicit concat); fold 1/(H*W) and tile the video
    # half over W so the W-reduction of the pool rides the classifier matmul.
    cwv = jnp.tile(p["c_w"][:, :Cout].T / float(HW), (W, 1))     # (W*Cout, cls)
    cwv = jnp.pad(cwv, ((0, 0), (0, cls_pad - num_classes))).astype(jnp.float32)
    cwa = jnp.pad(p["c_w"][:, Cout:].T,
                  ((0, 0), (0, cls_pad - num_classes))).astype(jnp.float32)
    cb = jnp.pad(p["c_b"].reshape(1, num_classes),
                 ((0, 0), (0, cls_pad - num_classes))).astype(jnp.float32)

    # TODO(synk): register_hook / activations_hook is an autograd CAM hook
    # (no forward-pass effect); dropout is eval-mode identity.

    kernel = functools.partial(_avc_fused_kernel,
                               tile_n=tile_n, h=H, wcout=wcout)
    rep2 = lambda i: (0, 0)      # replicated 2-D params
    out = pl.pallas_call(
        kernel,
        out_shape=jax.ShapeDtypeStruct((N, cls_pad), jnp.float32),
        grid=(N // tile_n,),
        in_specs=[
            pl.BlockSpec((tile_n, H + 2, lane), lambda i: (i, 0, 0)),  # video
            pl.BlockSpec((3, lane, wcout), lambda i: (0, 0, 0)),       # banded conv w
            pl.BlockSpec((1, wcout), rep2),                            # shift
            pl.BlockSpec((tile_n, Da), lambda i: (i, 0)),              # audio
            pl.BlockSpec((Da, Dh), rep2),
            pl.BlockSpec((1, Dh), rep2),
            pl.BlockSpec((Dh, Ca), rep2),
            pl.BlockSpec((1, Ca), rep2),
            pl.BlockSpec((wcout, cls_pad), rep2),                      # classifier video half
            pl.BlockSpec((Ca, cls_pad), rep2),                         # classifier audio half
            pl.BlockSpec((1, cls_pad), rep2),
        ],
        out_specs=pl.BlockSpec((tile_n, cls_pad), lambda i: (i, 0)),
        compiler_params=pltpu.CompilerParams(
            dimension_semantics=("parallel",)),
    )(x, wb, shift_t, audio, aw1, ab1, aw2, ab2, cwv, cwa, cb)
    return out[:, :num_classes]


# ---------------------------------------------------------------------------
# Pure-JAX reference (for correctness check)
# ---------------------------------------------------------------------------
def reference_forward(video, audio, p, eps=1e-5):
    conv = jax.lax.conv_general_dilated(
        video, p["conv_w"], window_strides=(1, 1), padding="SAME",
        dimension_numbers=("NCHW", "OIHW", "NCHW"))
    conv = conv + p["conv_b"][None, :, None, None]
    inv = (1.0 / jnp.sqrt(p["bn_var"] + eps))[None, :, None, None]
    bn = p["bn_gamma"][None, :, None, None] * (
        conv - p["bn_mean"][None, :, None, None]) * inv + \
        p["bn_beta"][None, :, None, None]
    vemb = jnp.mean(jnp.maximum(bn, 0.0), axis=(2, 3))
    h = jnp.maximum(audio @ p["a_w1"].T + p["a_b1"], 0.0)
    aemb = h @ p["a_w2"].T + p["a_b2"]
    emb = jnp.concatenate([vemb, aemb], axis=1)
    return emb @ p["c_w"].T + p["c_b"]


def make_params(key, Cin=3, Cv=32, Da=32, Dh=32, Ca=32, num_classes=10):
    ks = jax.random.split(key, 10)
    f32 = jnp.float32
    return {
        "conv_w": 0.1 * jax.random.normal(ks[0], (Cv, Cin, 3, 3), f32),
        "conv_b": 0.1 * jax.random.normal(ks[1], (Cv,), f32),
        "bn_gamma": 1.0 + 0.1 * jax.random.normal(ks[2], (Cv,), f32),
        "bn_beta": 0.1 * jax.random.normal(ks[3], (Cv,), f32),
        "bn_mean": 0.1 * jax.random.normal(ks[4], (Cv,), f32),
        "bn_var": 1.0 + 0.5 * jax.random.uniform(ks[5], (Cv,), f32),
        "a_w1": 0.1 * jax.random.normal(ks[6], (Dh, Da), f32),
        "a_b1": 0.1 * jax.random.normal(ks[7], (Dh,), f32),
        "a_w2": 0.1 * jax.random.normal(ks[8], (Ca, Dh), f32),
        "a_b2": jnp.zeros((Ca,), f32),
        "c_w": 0.1 * jax.random.normal(ks[9], (num_classes, Cv + Ca), f32),
        "c_b": jnp.zeros((num_classes,), f32),
    }


if __name__ == "__main__":
    key = jax.random.PRNGKey(0)
    k_v, k_a, k_p, k_v2, k_a2 = jax.random.split(key, 5)

    N, Cin, H, W = 2, 3, 16, 16
    Da = 32
    video = jax.random.normal(k_v, (N, Cin, H, W), jnp.float32)  # NCHW like torch
    audio = jax.random.normal(k_a, (N, Da), jnp.float32)
    params = make_params(k_p)

    fwd = jax.jit(avc_wrapper_cam_forward)
    logit = jax.block_until_ready(fwd(video, audio, params))
    ref = jax.block_until_ready(reference_forward(video, audio, params))
    assert logit.shape == (N, 10), logit.shape
    assert np.all(np.isfinite(np.asarray(logit)))
    np.testing.assert_allclose(np.asarray(logit), np.asarray(ref),
                               rtol=2e-2, atol=3e-2)

    # Also exercise the multi-step grid path (pipelining / megacore sharding).
    N2 = 16
    video2 = jax.random.normal(k_v2, (N2, Cin, H, W), jnp.float32)
    audio2 = jax.random.normal(k_a2, (N2, Da), jnp.float32)
    fwd2 = jax.jit(functools.partial(avc_wrapper_cam_forward, tile_n=8))
    logit2 = jax.block_until_ready(fwd2(video2, audio2, params))
    ref2 = reference_forward(video2, audio2, params)
    np.testing.assert_allclose(np.asarray(logit2), np.asarray(ref2),
                               rtol=2e-2, atol=3e-2)

    print("KERNEL_OK")
</pallas_src>

<mosaic_0001>
module attributes {stable_mosaic.version = 11 : i64} {
  func.func @_avc_fused_kernel(%arg0: i32, %arg1: memref<2x18x54xbf16, #tpu.memory_space<vmem>>, %arg2: memref<3x54x512xbf16, #tpu.memory_space<vmem>>, %arg3: memref<1x512xf32, #tpu.memory_space<vmem>>, %arg4: memref<2x32xf32, #tpu.memory_space<vmem>>, %arg5: memref<32x32xf32, #tpu.memory_space<vmem>>, %arg6: memref<1x32xf32, #tpu.memory_space<vmem>>, %arg7: memref<32x32xf32, #tpu.memory_space<vmem>>, %arg8: memref<1x32xf32, #tpu.memory_space<vmem>>, %arg9: memref<512x128xf32, #tpu.memory_space<vmem>>, %arg10: memref<32x128xf32, #tpu.memory_space<vmem>>, %arg11: memref<1x128xf32, #tpu.memory_space<vmem>>, %arg12: memref<2x128xf32, #tpu.memory_space<vmem>>) attributes {dimension_semantics = [#tpu.dimension_semantics<parallel>], iteration_bounds = array<i64: 1>, scalar_prefetch = 0 : i64, scratch_operands = 0 : i64, tpu.core_type = #tpu.core_type<tc>, window_params = [{transform_indices = @transform_0, window_bounds = array<i64: 2, 18, 54>}, {pipeline_mode = #tpu.pipeline_mode<synchronous>, transform_indices = @transform_1, window_bounds = array<i64: 3, 54, 512>}, {pipeline_mode = #tpu.pipeline_mode<synchronous>, transform_indices = @transform_2, window_bounds = array<i64: 1, 512>}, {transform_indices = @transform_3, window_bounds = array<i64: 2, 32>}, {pipeline_mode = #tpu.pipeline_mode<synchronous>, transform_indices = @transform_4, window_bounds = array<i64: 32, 32>}, {pipeline_mode = #tpu.pipeline_mode<synchronous>, transform_indices = @transform_5, window_bounds = array<i64: 1, 32>}, {pipeline_mode = #tpu.pipeline_mode<synchronous>, transform_indices = @transform_6, window_bounds = array<i64: 32, 32>}, {pipeline_mode = #tpu.pipeline_mode<synchronous>, transform_indices = @transform_7, window_bounds = array<i64: 1, 32>}, {pipeline_mode = #tpu.pipeline_mode<synchronous>, transform_indices = @transform_8, window_bounds = array<i64: 512, 128>}, {pipeline_mode = #tpu.pipeline_mode<synchronous>, transform_indices = @transform_9, window_bounds = array<i64: 32, 128>}, {pipeline_mode = #tpu.pipeline_mode<synchronous>, transform_indices = @transform_10, window_bounds = array<i64: 1, 128>}, {transform_indices = @transform_11, window_bounds = array<i64: 2, 128>}]} {
    %c0 = arith.constant 0 : index
    %c0_0 = arith.constant 0 : index
    %c0_1 = arith.constant 0 : index
    %0 = vector.load %arg1[%c0, %c0_0, %c0_1] : memref<2x18x54xbf16, #tpu.memory_space<vmem>>, vector<2x18x54xbf16>
    %cst = arith.constant 0.000000e+00 : f32
    %1 = vector.broadcast %cst : f32 to vector<32x512xf32>
    %2 = vector.extract_strided_slice %0 {offsets = [0, 0, 0], sizes = [2, 16, 54], strides = [1, 1, 1]} : vector<2x18x54xbf16> to vector<2x16x54xbf16>
    %3 = vector.shape_cast %2 : vector<2x16x54xbf16> to vector<32x54xbf16>
    %c0_2 = arith.constant 0 : index
    %c0_3 = arith.constant 0 : index
    %c0_4 = arith.constant 0 : index
    %4 = vector.load %arg2[%c0_2, %c0_3, %c0_4] : memref<3x54x512xbf16, #tpu.memory_space<vmem>>, vector<1x54x512xbf16>
    %5 = vector.shape_cast %4 : vector<1x54x512xbf16> to vector<54x512xbf16>
    %cst_5 = arith.constant dense<0.000000e+00> : vector<32x512xf32>
    %6 = tpu.matmul %3, %5, %cst_5 {dimension_numbers = #tpu.dot_dimension_numbers<[1], [0], [0], [1], [0, 0, 1, 1], [], []>} : vector<32x54xbf16>, vector<54x512xbf16>, vector<32x512xf32> -> vector<32x512xf32>
    %7 = arith.addf %1, %6 : vector<32x512xf32>
    %8 = vector.extract_strided_slice %0 {offsets = [0, 1, 0], sizes = [2, 16, 54], strides = [1, 1, 1]} : vector<2x18x54xbf16> to vector<2x16x54xbf16>
    %9 = vector.shape_cast %8 : vector<2x16x54xbf16> to vector<32x54xbf16>
    %c1 = arith.constant 1 : index
    %c0_6 = arith.constant 0 : index
    %c0_7 = arith.constant 0 : index
    %10 = vector.load %arg2[%c1, %c0_6, %c0_7] : memref<3x54x512xbf16, #tpu.memory_space<vmem>>, vector<1x54x512xbf16>
    %11 = vector.shape_cast %10 : vector<1x54x512xbf16> to vector<54x512xbf16>
    %cst_8 = arith.constant dense<0.000000e+00> : vector<32x512xf32>
    %12 = tpu.matmul %9, %11, %cst_8 {dimension_numbers = #tpu.dot_dimension_numbers<[1], [0], [0], [1], [0, 0, 1, 1], [], []>} : vector<32x54xbf16>, vector<54x512xbf16>, vector<32x512xf32> -> vector<32x512xf32>
    %13 = arith.addf %7, %12 : vector<32x512xf32>
    %14 = vector.extract_strided_slice %0 {offsets = [0, 2, 0], sizes = [2, 16, 54], strides = [1, 1, 1]} : vector<2x18x54xbf16> to vector<2x16x54xbf16>
    %15 = vector.shape_cast %14 : vector<2x16x54xbf16> to vector<32x54xbf16>
    %c2 = arith.constant 2 : index
    %c0_9 = arith.constant 0 : index
    %c0_10 = arith.constant 0 : index
    %16 = vector.load %arg2[%c2, %c0_9, %c0_10] : memref<3x54x512xbf16, #tpu.memory_space<vmem>>, vector<1x54x512xbf16>
    %17 = vector.shape_cast %16 : vector<1x54x512xbf16> to vector<54x512xbf16>
    %cst_11 = arith.constant dense<0.000000e+00> : vector<32x512xf32>
    %18 = tpu.matmul %15, %17, %cst_11 {dimension_numbers = #tpu.dot_dimension_numbers<[1], [0], [0], [1], [0, 0, 1, 1], [], []>} : vector<32x54xbf16>, vector<54x512xbf16>, vector<32x512xf32> -> vector<32x512xf32>
    %19 = arith.addf %13, %18 : vector<32x512xf32>
    %c0_12 = arith.constant 0 : index
    %c0_13 = arith.constant 0 : index
    %20 = vector.load %arg3[%c0_12, %c0_13] : memref<1x512xf32, #tpu.memory_space<vmem>>, vector<1x512xf32>
    %21 = vector.broadcast %20 : vector<1x512xf32> to vector<32x512xf32>
    %22 = arith.addf %19, %21 : vector<32x512xf32>
    %cst_14 = arith.constant 0.000000e+00 : f32
    %23 = vector.broadcast %cst_14 : f32 to vector<32x512xf32>
    %24 = arith.maximumf %22, %23 : vector<32x512xf32>
    %25 = vector.shape_cast %24 : vector<32x512xf32> to vector<2x16x512xf32>
    %cst_15 = arith.constant dense<0.000000e+00> : vector<2x512xf32>
    %26 = vector.multi_reduction <add>, %25, %cst_15 [1] : vector<2x16x512xf32> to vector<2x512xf32>
    %c0_16 = arith.constant 0 : index
    %c0_17 = arith.constant 0 : index
    %27 = vector.load %arg4[%c0_16, %c0_17] : memref<2x32xf32, #tpu.memory_space<vmem>>, vector<2x32xf32>
    %c0_18 = arith.constant 0 : index
    %c0_19 = arith.constant 0 : index
    %28 = vector.load %arg5[%c0_18, %c0_19] : memref<32x32xf32, #tpu.memory_space<vmem>>, vector<32x32xf32>
    %cst_20 = arith.constant dense<0.000000e+00> : vector<2x32xf32>
    %29 = tpu.matmul %27, %28, %cst_20 {dimension_numbers = #tpu.dot_dimension_numbers<[1], [0], [0], [1], [0, 0, 1, 1], [], []>} : vector<2x32xf32>, vector<32x32xf32>, vector<2x32xf32> -> vector<2x32xf32>
    %c0_21 = arith.constant 0 : index
    %c0_22 = arith.constant 0 : index
    %30 = vector.load %arg6[%c0_21, %c0_22] : memref<1x32xf32, #tpu.memory_space<vmem>>, vector<1x32xf32>
    %31 = vector.broadcast %30 : vector<1x32xf32> to vector<2x32xf32>
    %32 = arith.addf %29, %31 : vector<2x32xf32>
    %cst_23 = arith.constant 0.000000e+00 : f32
    %33 = vector.broadcast %cst_23 : f32 to vector<2x32xf32>
    %34 = arith.maximumf %32, %33 : vector<2x32xf32>
    %c0_24 = arith.constant 0 : index
    %c0_25 = arith.constant 0 : index
    %35 = vector.load %arg7[%c0_24, %c0_25] : memref<32x32xf32, #tpu.memory_space<vmem>>, vector<32x32xf32>
    %cst_26 = arith.constant dense<0.000000e+00> : vector<2x32xf32>
    %36 = tpu.matmul %34, %35, %cst_26 {dimension_numbers = #tpu.dot_dimension_numbers<[1], [0], [0], [1], [0, 0, 1, 1], [], []>} : vector<2x32xf32>, vector<32x32xf32>, vector<2x32xf32> -> vector<2x32xf32>
    %c0_27 = arith.constant 0 : index
    %c0_28 = arith.constant 0 : index
    %37 = vector.load %arg8[%c0_27, %c0_28] : memref<1x32xf32, #tpu.memory_space<vmem>>, vector<1x32xf32>
    %38 = vector.broadcast %37 : vector<1x32xf32> to vector<2x32xf32>
    %39 = arith.addf %36, %38 : vector<2x32xf32>
    %c0_29 = arith.constant 0 : index
    %c0_30 = arith.constant 0 : index
    %40 = vector.load %arg9[%c0_29, %c0_30] : memref<512x128xf32, #tpu.memory_space<vmem>>, vector<512x128xf32>
    %cst_31 = arith.constant dense<0.000000e+00> : vector<2x128xf32>
    %41 = tpu.matmul %26, %40, %cst_31 {dimension_numbers = #tpu.dot_dimension_numbers<[1], [0], [0], [1], [0, 0, 1, 1], [], []>} : vector<2x512xf32>, vector<512x128xf32>, vector<2x128xf32> -> vector<2x128xf32>
    %c0_32 = arith.constant 0 : index
    %c0_33 = arith.constant 0 : index
    %42 = vector.load %arg10[%c0_32, %c0_33] : memref<32x128xf32, #tpu.memory_space<vmem>>, vector<32x128xf32>
    %cst_34 = arith.constant dense<0.000000e+00> : vector<2x128xf32>
    %43 = tpu.matmul %39, %42, %cst_34 {dimension_numbers = #tpu.dot_dimension_numbers<[1], [0], [0], [1], [0, 0, 1, 1], [], []>} : vector<2x32xf32>, vector<32x128xf32>, vector<2x128xf32> -> vector<2x128xf32>
    %44 = arith.addf %41, %43 : vector<2x128xf32>
    %c0_35 = arith.constant 0 : index
    %c0_36 = arith.constant 0 : index
    %45 = vector.load %arg11[%c0_35, %c0_36] : memref<1x128xf32, #tpu.memory_space<vmem>>, vector<1x128xf32>
    %46 = vector.broadcast %45 : vector<1x128xf32> to vector<2x128xf32>
    %47 = arith.addf %44, %46 : vector<2x128xf32>
    %c0_37 = arith.constant 0 : index
    %c0_38 = arith.constant 0 : index
    %48 = vector.load %arg12[%c0_37, %c0_38] : memref<2x128xf32, #tpu.memory_space<vmem>>, vector<2x128xf32>
    tpu.vector_store %arg12[%c0_37, %c0_38], %47 {strides = array<i32>} : memref<2x128xf32, #tpu.memory_space<vmem>>, vector<2x128xf32>,
    return
  }
  func.func @transform_0(%arg0: i32) -> (i32, i32, i32) {
    %c0_i32 = arith.constant 0 : i32
    %c0_i32_0 = arith.constant 0 : i32
    %c0_i32_1 = arith.constant 0 : i32
    return %arg0, %c0_i32, %c0_i32_0 : i32, i32, i32
  }
  func.func @transform_1(%arg0: i32) -> (i32, i32, i32) {
    %c0_i32 = arith.constant 0 : i32
    %c0_i32_0 = arith.constant 0 : i32
    %c0_i32_1 = arith.constant 0 : i32
    %c0_i32_2 = arith.constant 0 : i32
    return %c0_i32, %c0_i32_0, %c0_i32_1 : i32, i32, i32
  }
  func.func @transform_2(%arg0: i32) -> (i32, i32) {
    %c0_i32 = arith.constant 0 : i32
    %c0_i32_0 = arith.constant 0 : i32
    %c0_i32_1 = arith.constant 0 : i32
    return %c0_i32, %c0_i32_0 : i32, i32
  }
  func.func @transform_3(%arg0: i32) -> (i32, i32) {
    %c0_i32 = arith.constant 0 : i32
    %c0_i32_0 = arith.constant 0 : i32
    return %arg0, %c0_i32 : i32, i32
  }
  func.func @transform_4(%arg0: i32) -> (i32, i32) {
    %c0_i32 = arith.constant 0 : i32
    %c0_i32_0 = arith.constant 0 : i32
    %c0_i32_1 = arith.constant 0 : i32
    return %c0_i32, %c0_i32_0 : i32, i32
  }
  func.func @transform_5(%arg0: i32) -> (i32, i32) {
    %c0_i32 = arith.constant 0 : i32
    %c0_i32_0 = arith.constant 0 : i32
    %c0_i32_1 = arith.constant 0 : i32
    return %c0_i32, %c0_i32_0 : i32, i32
  }
  func.func @transform_6(%arg0: i32) -> (i32, i32) {
    %c0_i32 = arith.constant 0 : i32
    %c0_i32_0 = arith.constant 0 : i32
    %c0_i32_1 = arith.constant 0 : i32
    return %c0_i32, %c0_i32_0 : i32, i32
  }
  func.func @transform_7(%arg0: i32) -> (i32, i32) {
    %c0_i32 = arith.constant 0 : i32
    %c0_i32_0 = arith.constant 0 : i32
    %c0_i32_1 = arith.constant 0 : i32
    return %c0_i32, %c0_i32_0 : i32, i32
  }
  func.func @transform_8(%arg0: i32) -> (i32, i32) {
    %c0_i32 = arith.constant 0 : i32
    %c0_i32_0 = arith.constant 0 : i32
    %c0_i32_1 = arith.constant 0 : i32
    return %c0_i32, %c0_i32_0 : i32, i32
  }
  func.func @transform_9(%arg0: i32) -> (i32, i32) {
    %c0_i32 = arith.constant 0 : i32
    %c0_i32_0 = arith.constant 0 : i32
    %c0_i32_1 = arith.constant 0 : i32
    return %c0_i32, %c0_i32_0 : i32, i32
  }
  func.func @transform_10(%arg0: i32) -> (i32, i32) {
    %c0_i32 = arith.constant 0 : i32
    %c0_i32_0 = arith.constant 0 : i32
    %c0_i32_1 = arith.constant 0 : i32
    return %c0_i32, %c0_i32_0 : i32, i32
  }
  func.func @transform_11(%arg0: i32) -> (i32, i32) {
    %c0_i32 = arith.constant 0 : i32
    %c0_i32_0 = arith.constant 0 : i32
    return %arg0, %c0_i32 : i32, i32
  }
}

</mosaic_0001>

<llo_original>
// kernel: tile.13
$region0: #{tile.13}
  #allocation0 [shape = 's32[1]{0}', space=sflag, size = 0x4, scoped, tag = 'scoped memory for tile.13']
  %s0 = inlined_call_operand.vmem [shape: f32[32], index: 0, kind: input, shape index: {}]
  %s1 = inlined_call_operand.vmem [shape: f32[16,32], index: 1, kind: output, shape index: {}]
  // Predicated region
  $region2: #{tile.13} parent=0 // pred_check
    _
  $region3: #{tile.13} parent=0 // pred_check_branch
    %3 = sbr.rel (0) target = $region5
  $region4: #{tile.13} parent=0 // pred_region
    _
  $region5: #{tile.13} parent=0 // pred_fallthru
    _
  %v4 = vld [vmem:[%s0] ss:$0 sm:$0xff]
  %5 = vst [vmem:[%s1] sm:$0xff] %v4
  %s6 = scalar_lea.vmem %s1, 8
  %7 = vst [vmem:[%s6] sm:$0xff] %v4

// kernel: tile.14
$region0: #{tile.14}
  %s0 = inlined_call_operand.vmem [shape: f32[16,32], index: 0, kind: input, shape index: {}]
  %s1 = inlined_call_operand.vmem [shape: f32[1,512], index: 1, kind: output, shape index: {}]
  $region1: #{tile.14} parent=0
    #allocation0 [shape = 'u8[16384]{0}', space=vmem, size = 0x4000, scoped, tag = 'scoped mem for output reshape']
    %v2 = vld [vmem:[%s0] ss:$4 sm:$0xf]
    %vm3 = vcmask 261120
    %4 = vst.msk [vmem:[#allocation0] ss:$8 sm:$0xf] %vm3, %v2
    %s5 = scalar_lea.vmem %s0, 3
    %v6 = vld [vmem:[%s5] ss:$4 sm:$0xf]
    %7 = vrot.lane.b32.xlu0 %v6, 96
    %v8 = vpop.permute.xlu0 %7
    %vm9 = vcmask 1048320
    %10 = vst.msk [vmem:[#allocation0] ss:$8 sm:$0xf] %vm9, %v8
    %s11 = scalar_lea.vmem %s0, 2
    %v12 = vld [vmem:[%s11] ss:$4 sm:$0xf]
    %13 = vrot.lane.b32.xlu0 %v12, 64
    %v14 = vpop.permute.xlu0 %13
    %vm15 = vcmask 785920
    %16 = vst.msk [vmem:[#allocation0] ss:$8 sm:$0xf] %vm15, %v14
    %s17 = scalar_lea.vmem %s0, 1
    %v18 = vld [vmem:[%s17] ss:$4 sm:$0xf]
    %19 = vrot.lane.b32.xlu0 %v18, 32
    %v20 = vpop.permute.xlu0 %19
    %vm21 = vcmask 523520
    %22 = vst.msk [vmem:[#allocation0] ss:$8 sm:$0xf] %vm21, %v20
    %s24 = sshll.u32 1, 1
    %s25 = ssub.s32 %s24, 1
    %v27 = vld [vmem:[#allocation0] sm:%s25]
    %s28 = sshll.u32 1, 1
    %s29 = ssub.s32 %s28, 1
    %30 = vst [vmem:[%s1] sm:%s29] %v27
    %s31 = scalar_lea.vmem [#allocation0], 8
    %v32 = vld [vmem:[%s31] sm:%s25]
    %s33 = sshll.u32 1, 1
    %s34 = ssub.s32 %s33, 1
    %s35 = scalar_lea.vmem %s1, 1
    %36 = vst [vmem:[%s35] sm:%s34] %v32
    %s37 = scalar_lea.vmem [#allocation0], 16
    %v38 = vld [vmem:[%s37] sm:%s25]
    %s39 = sshll.u32 1, 1
    %s40 = ssub.s32 %s39, 1
    %s41 = smul.addr 1, 2
    %s42 = scalar_lea.vmem %s1, %s41
    %43 = vst [vmem:[%s42] sm:%s40] %v38
    %s44 = scalar_lea.vmem [#allocation0], 24
    %v45 = vld [vmem:[%s44] sm:%s25]
    %s46 = sshll.u32 1, 1
    %s47 = ssub.s32 %s46, 1
    %s48 = smul.addr 1, 3
    %s49 = scalar_lea.vmem %s1, %s48
    %50 = vst [vmem:[%s49] sm:%s47] %v45

// kernel: avc_wrapper_cam_forward.1
$region0: #{avc_wrapper_cam_forward.1}
  #allocation0 [shape = 'u32[]', space=smem, size = 0x4, offset = 0x4, fixed_abs, tag = 'smem constant byte address 0x4 - core index']
  #allocation1 [shape = 'u32[144,128]{1,0:T(1,128)}', space=vmem, size = 0x12000, scoped, tag = 'internal scratch']
  %s0 = inlined_call_operand.vmem [shape: bf16[2,18,54], index: 0, kind: input, shape index: {}]
  %s1 = inlined_call_operand.vmem [shape: bf16[3,54,512], index: 1, kind: input, shape index: {}]
  %s2 = inlined_call_operand.vmem [shape: f32[1,512], index: 2, kind: input, shape index: {}]
  %s3 = inlined_call_operand.vmem [shape: f32[2,32], index: 3, kind: input, shape index: {}]
  %s4 = inlined_call_operand.vmem [shape: f32[32,32], index: 4, kind: input, shape index: {}]
  %s5 = inlined_call_operand.vmem [shape: f32[1,32], index: 5, kind: input, shape index: {}]
  %s6 = inlined_call_operand.vmem [shape: f32[32,32], index: 6, kind: input, shape index: {}]
  %s7 = inlined_call_operand.vmem [shape: f32[1,32], index: 7, kind: input, shape index: {}]
  %s8 = inlined_call_operand.vmem [shape: f32[512,128], index: 8, kind: input, shape index: {}]
  %s9 = inlined_call_operand.vmem [shape: f32[32,128], index: 9, kind: input, shape index: {}]
  %s10 = inlined_call_operand.vmem [shape: f32[1,128], index: 10, kind: input, shape index: {}]
  %s11 = inlined_call_operand.hbm [shape: f32[2,128], index: 11, kind: output, shape index: {}]
  %s12 = sld [smem:[#allocation0]]
  $region54: #{avc_wrapper_cam_forward.1} parent=0
    _
  %s14 = ssub.s32 1, %s12
  %s15 = scalar_select 0, %s14, %s12
  $region1: #{avc_wrapper_cam_forward.1} parent=0
    #allocation2 [shape = 'u8[1024]{0}', space=vmem, size = 0x400, scoped, tag = 'output window, operand 0, single buffered']
    #allocation3 [shape = 's32[1]{0}', space=sflag, size = 0x4, scoped, tag = 'scoped memory for avc_wrapper_cam_forward.1']
    %16 = vsyncpa [#allocation3], 0
    // Predicated region
    $region2: #{avc_wrapper_cam_forward.1} parent=1 // pred_check
      _
    $region3: #{avc_wrapper_cam_forward.1} parent=1 // pred_check_branch
      %18 = sbr.rel (0) target = $region5
    $region4: #{avc_wrapper_cam_forward.1} parent=1 // pred_region
      _
    $region5: #{avc_wrapper_cam_forward.1} parent=1 // pred_fallthru
      _
    // Predicated region
    $region6: #{avc_wrapper_cam_forward.1} parent=1 // pred_check
      _
    $region7: #{avc_wrapper_cam_forward.1} parent=1 // pred_check_branch
      %20 = sbr.rel (0) target = $region9
    $region8: #{avc_wrapper_cam_forward.1} parent=1 // pred_region
      _
    $region9: #{avc_wrapper_cam_forward.1} parent=1 // pred_fallthru
      _
    // Predicated region
    $region10: #{avc_wrapper_cam_forward.1} parent=1 // pred_check
      _
    $region11: #{avc_wrapper_cam_forward.1} parent=1 // pred_check_branch
      %22 = sbr.rel (0) target = $region13
    $region12: #{avc_wrapper_cam_forward.1} parent=1 // pred_region
      _
    $region13: #{avc_wrapper_cam_forward.1} parent=1 // pred_fallthru
      _
    // Predicated region
    $region14: #{avc_wrapper_cam_forward.1} parent=1 // pred_check
      _
    $region15: #{avc_wrapper_cam_forward.1} parent=1 // pred_check_branch
      %24 = sbr.rel (0) target = $region17
    $region16: #{avc_wrapper_cam_forward.1} parent=1 // pred_region
      _
    $region17: #{avc_wrapper_cam_forward.1} parent=1 // pred_fallthru
      _
    // Predicated region
    $region18: #{avc_wrapper_cam_forward.1} parent=1 // pred_check
      _
    $region19: #{avc_wrapper_cam_forward.1} parent=1 // pred_check_branch
      %26 = sbr.rel (0) target = $region21
    $region20: #{avc_wrapper_cam_forward.1} parent=1 // pred_region
      _
    $region21: #{avc_wrapper_cam_forward.1} parent=1 // pred_fallthru
      _
    // Predicated region
    $region22: #{avc_wrapper_cam_forward.1} parent=1 // pred_check
      _
    $region23: #{avc_wrapper_cam_forward.1} parent=1 // pred_check_branch
      %28 = sbr.rel (0) target = $region25
    $region24: #{avc_wrapper_cam_forward.1} parent=1 // pred_region
      _
    $region25: #{avc_wrapper_cam_forward.1} parent=1 // pred_fallthru
      _
    // Predicated region
    $region26: #{avc_wrapper_cam_forward.1} parent=1 // pred_check
      _
    $region27: #{avc_wrapper_cam_forward.1} parent=1 // pred_check_branch
      %30 = sbr.rel (0) target = $region29
    $region28: #{avc_wrapper_cam_forward.1} parent=1 // pred_region
      _
    $region29: #{avc_wrapper_cam_forward.1} parent=1 // pred_fallthru
      _
    // Predicated region
    $region30: #{avc_wrapper_cam_forward.1} parent=1 // pred_check
      _
    $region31: #{avc_wrapper_cam_forward.1} parent=1 // pred_check_branch
      %32 = sbr.rel (0) target = $region33
    $region32: #{avc_wrapper_cam_forward.1} parent=1 // pred_region
      _
    $region33: #{avc_wrapper_cam_forward.1} parent=1 // pred_fallthru
      _
    // Predicated region
    $region34: #{avc_wrapper_cam_forward.1} parent=1 // pred_check
      _
    $region35: #{avc_wrapper_cam_forward.1} parent=1 // pred_check_branch
      %34 = sbr.rel (0) target = $region37
    $region36: #{avc_wrapper_cam_forward.1} parent=1 // pred_region
      _
    $region37: #{avc_wrapper_cam_forward.1} parent=1 // pred_fallthru
      _
    // Predicated region
    $region38: #{avc_wrapper_cam_forward.1} parent=1 // pred_check
      _
    $region39: #{avc_wrapper_cam_forward.1} parent=1 // pred_check_branch
      %36 = sbr.rel (0) target = $region41
    $region40: #{avc_wrapper_cam_forward.1} parent=1 // pred_region
      _
    $region41: #{avc_wrapper_cam_forward.1} parent=1 // pred_fallthru
      _
    // Predicated region
    $region42: #{avc_wrapper_cam_forward.1} parent=1 // pred_check
      _
    $region43: #{avc_wrapper_cam_forward.1} parent=1 // pred_check_branch
      %38 = sbr.rel (0) target = $region45
    $region44: #{avc_wrapper_cam_forward.1} parent=1 // pred_region
      _
    $region45: #{avc_wrapper_cam_forward.1} parent=1 // pred_fallthru
      _
    %v40 = vld [vmem:[%s0] sm:$0xf]
    %v41 = vld [vmem:[%s0 + $0x4] sm:$0xf]
    %v42 = vld [vmem:[%s0 + $0x8] sm:$0x1]
    %v43 = vld [vmem:[%s0 + $0xc] sm:$0xf]
    %v44 = vld [vmem:[%s0 + $0x10] sm:$0xf]
    %v45 = vld [vmem:[%s0 + $0x14] sm:$0x1]
    %v46 = vld [vmem:[%s1] sm:$0xff]
    %v47 = vld [vmem:[%s1 + $0x8] sm:$0xff]
    %v48 = vld [vmem:[%s1 + $0x10] sm:$0xff]
    %v49 = vld [vmem:[%s1 + $0x18] sm:$0xff]
    %v50 = vld [vmem:[%s1 + $0x20] sm:$0xff]
    %v51 = vld [vmem:[%s1 + $0x28] sm:$0xff]
    %v52 = vld [vmem:[%s1 + $0x30] sm:$0xff]
    %v53 = vld [vmem:[%s1 + $0x38] sm:$0xff]
    %v54 = vld [vmem:[%s1 + $0x40] sm:$0xff]
    %v55 = vld [vmem:[%s1 + $0x48] sm:$0xff]
    %v56 = vld [vmem:[%s1 + $0x50] sm:$0xff]
    %v57 = vld [vmem:[%s1 + $0x58] sm:$0xff]
    %v58 = vld [vmem:[%s1 + $0x60] sm:$0x77]
    %v59 = vld [vmem:[%s1 + $0x68] sm:$0x77]
    %vm60 = vsmask.f32 3328
    %vm61 = vsmask.f32 7440
    %vm62 = vmor %vm60, %vm61
    %v64 = vshrl.u32 %v40, 16
    %v66 = vrot.slane %v64, 4
    %v67 = vshll.u32 %v40, 16
    %v69 = vrot.slane %v67, 5
    %v70 = vor.u32 %v66, %v69
    %v71 = vrot.slane %v70, 4
    %v73 = vshll.u32 %v41, 16
    %v75 = vrot.slane %v73, 5
    %v76 = vsel %vm62, %v71, %v75
    %v77 = vshrl.u32 %v41, 16
    %v79 = vrot.slane %v77, 4
    %v80 = vor.u32 %v79, %v75
    %v81 = vrot.slane %v80, 4
    %v83 = vshll.u32 %v42, 16
    %v85 = vrot.slane %v83, 5
    %v86 = vsel %vm62, %v81, %v85
    %v88 = vshrl.u32 %v43, 16
    %v90 = vrot.slane %v88, 4
    %v91 = vshll.u32 %v43, 16
    %v93 = vrot.slane %v91, 5
    %v94 = vor.u32 %v90, %v93
    %v95 = vrot.slane %v94, 4
    %v97 = vshll.u32 %v44, 16
    %v99 = vrot.slane %v97, 5
    %v100 = vsel %vm62, %v95, %v99
    %v101 = vshrl.u32 %v44, 16
    %v103 = vrot.slane %v101, 4
    %v104 = vor.u32 %v103, %v99
    %v105 = vrot.slane %v104, 4
    %v107 = vshll.u32 %v45, 16
    %v109 = vrot.slane %v107, 5
    %v110 = vsel %vm62, %v105, %v109
    %s111 = scalar_lea.vmem %s1, 112
    %v112 = vld [vmem:[%s111] sm:$0xff]
    %v113 = vld [vmem:[%s111 + $0x8] sm:$0xff]
    %v114 = vld [vmem:[%s111 + $0x10] sm:$0xff]
    %v115 = vld [vmem:[%s111 + $0x18] sm:$0xff]
    %v116 = vld [vmem:[%s111 + $0x20] sm:$0xff]
    %v117 = vld [vmem:[%s111 + $0x28] sm:$0xff]
    %v118 = vld [vmem:[%s111 + $0x30] sm:$0xff]
    %v119 = vld [vmem:[%s111 + $0x38] sm:$0xff]
    %v120 = vld [vmem:[%s111 + $0x40] sm:$0xff]
    %v121 = vld [vmem:[%s111 + $0x48] sm:$0xff]
    %v122 = vld [vmem:[%s111 + $0x50] sm:$0xff]
    %v123 = vld [vmem:[%s111 + $0x58] sm:$0xff]
    %v124 = vld [vmem:[%s111 + $0x60] sm:$0x77]
    %v125 = vld [vmem:[%s111 + $0x68] sm:$0x77]
    %v126 = vunpack.c.l.b16 %v76
    %v127 = vunpack.c.l.b16 %v86
    %v128 = vunpack.c.l.b16 %v100
    %v129 = vunpack.c.l.b16 %v110
    %v130 = vpack.c.b16 %v127, %v126
    %v131 = vpack.c.b16 %v129, %v128
    %v146 = vunpack.c.l.b16 %v112
    %v147 = vunpack.c.h.b16 %v112
    %v148 = vunpack.c.l.b16 %v113
    %v149 = vunpack.c.h.b16 %v113
    %v150 = vunpack.c.l.b16 %v114
    %v151 = vunpack.c.h.b16 %v114
    %v152 = vunpack.c.l.b16 %v115
    %v153 = vunpack.c.h.b16 %v115
    %v154 = vunpack.c.l.b16 %v116
    %v155 = vunpack.c.h.b16 %v116
    %v156 = vunpack.c.l.b16 %v117
    %v157 = vunpack.c.h.b16 %v117
    %v158 = vunpack.c.l.b16 %v118
    %v159 = vunpack.c.h.b16 %v118
    %v160 = vunpack.c.l.b16 %v119
    %v161 = vunpack.c.h.b16 %v119
    %v162 = vunpack.c.l.b16 %v120
    %v163 = vunpack.c.h.b16 %v120
    %v164 = vunpack.c.l.b16 %v121
    %v165 = vunpack.c.h.b16 %v121
    %v166 = vunpack.c.l.b16 %v122
    %v167 = vunpack.c.h.b16 %v122
    %v168 = vunpack.c.l.b16 %v123
    %v169 = vunpack.c.h.b16 %v123
    %v170 = vunpack.c.l.b16 %v124
    %v171 = vunpack.c.h.b16 %v124
    %v172 = vunpack.c.l.b16 %v125
    %v173 = vunpack.c.h.b16 %v125
    %v174 = vpack.c.b16 %v150, %v146
    %v175 = vpack.c.b16 %v151, %v147
    %v176 = vpack.c.b16 %v152, %v148
    %v177 = vpack.c.b16 %v153, %v149
    %v178 = vpack.c.b16 %v158, %v154
    %v179 = vpack.c.b16 %v159, %v155
    %v180 = vpack.c.b16 %v160, %v156
    %v181 = vpack.c.b16 %v161, %v157
    %v182 = vpack.c.b16 %v166, %v162
    %v183 = vpack.c.b16 %v167, %v163
    %v184 = vpack.c.b16 %v168, %v164
    %v185 = vpack.c.b16 %v169, %v165
    %v186 = vpack.c.b16 %v170, %v170
    %v187 = vpack.c.b16 %v171, %v171
    %v188 = vpack.c.b16 %v172, %v172
    %v189 = vpack.c.b16 %v173, %v173
    %vm202 = vcmask 441344
    %v204 = vsel %vm202, %v130, 0
    %v207 = vsel %vm202, %v131, 0
    %vm209 = vcmask 1042432
    %v211 = vsel %vm209, %v186, 0
    %v214 = vsel %vm209, %v187, 0
    %v217 = vsel %vm209, %v188, 0
    %v220 = vsel %vm209, %v189, 0
    %222 = vmatprep.subr.bf16.mxu0 0
    %223 = vmatpush1.bf16.msra.mxu0 0
    %224 = vmatprep.subr.bf16.mxu0 0
    %225 = vmatpush1.bf16.msra.mxu0 0
    %226 = vmatprep.subr.bf16.mxu0 0
    %227 = vmatpush1.bf16.msra.mxu0 0
    %228 = vmatprep.subr.bf16.mxu0 0
    %229 = vmatpush1.bf16.msra.mxu0 0
    %230 = vmatprep.subr.bf16.mxu0 %v214
    %231 = vmatpush1.bf16.msra.mxu0 %v211
    %232 = vmatprep.subr.bf16.mxu0 %v183
    %233 = vmatpush1.bf16.msra.mxu0 %v182
    %234 = vmatprep.subr.bf16.mxu0 %v179
    %235 = vmatpush1.bf16.msra.mxu0 %v178
    %236 = vmatprep.subr.bf16.mxu0 %v175
    %237 = vmatpush1.bf16.msra.mxu0 %v174
    %238 = vmatprep.subr.bf16.mxu0 0
    %239 = vmatpush2.bf16.msra.mxu0 0
    %240 = vmatprep.subr.bf16.mxu0 0
    %241 = vmatpush2.bf16.msra.mxu0 0
    %242 = vmatprep.subr.bf16.mxu0 0
    %243 = vmatpush2.bf16.msra.mxu0 0
    %244 = vmatprep.subr.bf16.mxu0 0
    %245 = vmatpush2.bf16.msra.mxu0 0
    %246 = vmatprep.subr.bf16.mxu0 0
    %247 = vmatpush2.bf16.msra.mxu0 0
    %248 = vmatprep.subr.bf16.mxu0 0
    %249 = vmatpush2.bf16.msra.mxu0 0
    %250 = vmatprep.subr.bf16.mxu0 0
    %251 = vmatpush2.bf16.msra.mxu0 0
    %252 = vmatprep.subr.bf16.mxu0 0
    %253 = vmatpush2.bf16.msra.mxu0 0
    %254 = vmatprep.mubr.bf16.mxu0 0
    %255 = vmatmul.mubr.bf16.gmra.mxu0 %v204
    %v256 = vpop.f32.mrf.mxu0
    %v257 = vadd.f32 0.0, %v256
    %v258 = vpop.f32.mrf.mxu0
    %v259 = vadd.f32 0.0, %v258
    %v260 = vpop.f32.mrf.mxu0
    %v261 = vadd.f32 0.0, %v260
    %v262 = vpop.f32.mrf.mxu0
    %v263 = vadd.f32 0.0, %v262
    %264 = vmatprep.mubr.bf16.mxu0 0
    %265 = vmatmul.mubr.bf16.gmra.mxu0 %v207
    %v266 = vpop.f32.mrf.mxu0
    %v267 = vadd.f32 0.0, %v266
    %v268 = vpop.f32.mrf.mxu0
    %v269 = vadd.f32 0.0, %v268
    %v270 = vpop.f32.mrf.mxu0
    %v271 = vadd.f32 0.0, %v270
    %v272 = vpop.f32.mrf.mxu0
    %v273 = vadd.f32 0.0, %v272
    %274 = vdwg.mxu0
    %275 = vmatprep.subr.bf16.mxu0 0
    %276 = vmatpush1.bf16.msra.mxu0 0
    %277 = vmatprep.subr.bf16.mxu0 0
    %278 = vmatpush1.bf16.msra.mxu0 0
    %279 = vmatprep.subr.bf16.mxu0 0
    %280 = vmatpush1.bf16.msra.mxu0 0
    %281 = vmatprep.subr.bf16.mxu0 0
    %282 = vmatpush1.bf16.msra.mxu0 0
    %283 = vmatprep.subr.bf16.mxu0 %v220
    %284 = vmatpush1.bf16.msra.mxu0 %v217
    %285 = vmatprep.subr.bf16.mxu0 %v185
    %286 = vmatpush1.bf16.msra.mxu0 %v184
    %287 = vmatprep.subr.bf16.mxu0 %v181
    %288 = vmatpush1.bf16.msra.mxu0 %v180
    %289 = vmatprep.subr.bf16.mxu0 %v177
    %290 = vmatpush1.bf16.msra.mxu0 %v176
    %291 = vmatprep.subr.bf16.mxu0 0
    %292 = vmatpush2.bf16.msra.mxu0 0
    %293 = vmatprep.subr.bf16.mxu0 0
    %294 = vmatpush2.bf16.msra.mxu0 0
    %295 = vmatprep.subr.bf16.mxu0 0
    %296 = vmatpush2.bf16.msra.mxu0 0
    %297 = vmatprep.subr.bf16.mxu0 0
    %298 = vmatpush2.bf16.msra.mxu0 0
    %299 = vmatprep.subr.bf16.mxu0 0
    %300 = vmatpush2.bf16.msra.mxu0 0
    %301 = vmatprep.subr.bf16.mxu0 0
    %302 = vmatpush2.bf16.msra.mxu0 0
    %303 = vmatprep.subr.bf16.mxu0 0
    %304 = vmatpush2.bf16.msra.mxu0 0
    %305 = vmatprep.subr.bf16.mxu0 0
    %306 = vmatpush2.bf16.msra.mxu0 0
    %307 = vmatprep.mubr.bf16.mxu0 0
    %308 = vmatmul.mubr.bf16.gmra.mxu0 %v204
    %v309 = vpop.f32.mrf.mxu0
    %v310 = vadd.f32 0.0, %v309
    %v311 = vpop.f32.mrf.mxu0
    %v312 = vadd.f32 0.0, %v311
    %v313 = vpop.f32.mrf.mxu0
    %v314 = vadd.f32 0.0, %v313
    %v315 = vpop.f32.mrf.mxu0
    %v316 = vadd.f32 0.0, %v315
    %317 = vmatprep.mubr.bf16.mxu0 0
    %318 = vmatmul.mubr.bf16.gmra.mxu0 %v207
    %v319 = vpop.f32.mrf.mxu0
    %v320 = vadd.f32 0.0, %v319
    %v321 = vpop.f32.mrf.mxu0
    %v322 = vadd.f32 0.0, %v321
    %v323 = vpop.f32.mrf.mxu0
    %v324 = vadd.f32 0.0, %v323
    %v325 = vpop.f32.mrf.mxu0
    %v326 = vadd.f32 0.0, %v325
    %327 = vdwg.mxu0
    %v332 = vunpack.c.l.b16 %v40
    %v333 = vunpack.c.l.b16 %v41
    %v334 = vunpack.c.l.b16 %v43
    %v335 = vunpack.c.l.b16 %v44
    %v336 = vpack.c.b16 %v333, %v332
    %v337 = vpack.c.b16 %v335, %v334
    %v352 = vunpack.c.l.b16 %v46
    %v353 = vunpack.c.h.b16 %v46
    %v354 = vunpack.c.l.b16 %v47
    %v355 = vunpack.c.h.b16 %v47
    %v356 = vunpack.c.l.b16 %v48
    %v357 = vunpack.c.h.b16 %v48
    %v358 = vunpack.c.l.b16 %v49
    %v359 = vunpack.c.h.b16 %v49
    %v360 = vunpack.c.l.b16 %v50
    %v361 = vunpack.c.h.b16 %v50
    %v362 = vunpack.c.l.b16 %v51
    %v363 = vunpack.c.h.b16 %v51
    %v364 = vunpack.c.l.b16 %v52
    %v365 = vunpack.c.h.b16 %v52
    %v366 = vunpack.c.l.b16 %v53
    %v367 = vunpack.c.h.b16 %v53
    %v368 = vunpack.c.l.b16 %v54
    %v369 = vunpack.c.h.b16 %v54
    %v370 = vunpack.c.l.b16 %v55
    %v371 = vunpack.c.h.b16 %v55
    %v372 = vunpack.c.l.b16 %v56
    %v373 = vunpack.c.h.b16 %v56
    %v374 = vunpack.c.l.b16 %v57
    %v375 = vunpack.c.h.b16 %v57
    %v376 = vunpack.c.l.b16 %v58
    %v377 = vunpack.c.h.b16 %v58
    %v378 = vunpack.c.l.b16 %v59
    %v379 = vunpack.c.h.b16 %v59
    %v380 = vpack.c.b16 %v356, %v352
    %v381 = vpack.c.b16 %v357, %v353
    %v382 = vpack.c.b16 %v358, %v354
    %v383 = vpack.c.b16 %v359, %v355
    %v384 = vpack.c.b16 %v364, %v360
    %v385 = vpack.c.b16 %v365, %v361
    %v386 = vpack.c.b16 %v366, %v362
    %v387 = vpack.c.b16 %v367, %v363
    %v388 = vpack.c.b16 %v372, %v368
    %v389 = vpack.c.b16 %v373, %v369
    %v390 = vpack.c.b16 %v374, %v370
    %v391 = vpack.c.b16 %v375, %v371
    %v392 = vpack.c.b16 %v376, %v376
    %v393 = vpack.c.b16 %v377, %v377
    %v394 = vpack.c.b16 %v378, %v378
    %v395 = vpack.c.b16 %v379, %v379
    %v409 = vsel %vm202, %v336, 0
    %v412 = vsel %vm202, %v337, 0
    %v415 = vsel %vm209, %v392, 0
    %v418 = vsel %vm209, %v393, 0
    %v421 = vsel %vm209, %v394, 0
    %v424 = vsel %vm209, %v395, 0
    %426 = vmatprep.subr.bf16.mxu0 0
    %427 = vmatpush1.bf16.msra.mxu0 0
    %428 = vmatprep.subr.bf16.mxu0 0
    %429 = vmatpush1.bf16.msra.mxu0 0
    %430 = vmatprep.subr.bf16.mxu0 0
    %431 = vmatpush1.bf16.msra.mxu0 0
    %432 = vmatprep.subr.bf16.mxu0 0
    %433 = vmatpush1.bf16.msra.mxu0 0
    %434 = vmatprep.subr.bf16.mxu0 %v418
    %435 = vmatpush1.bf16.msra.mxu0 %v415
    %436 = vmatprep.subr.bf16.mxu0 %v389
    %437 = vmatpush1.bf16.msra.mxu0 %v388
    %438 = vmatprep.subr.bf16.mxu0 %v385
    %439 = vmatpush1.bf16.msra.mxu0 %v384
    %440 = vmatprep.subr.bf16.mxu0 %v381
    %441 = vmatpush1.bf16.msra.mxu0 %v380
    %442 = vmatprep.subr.bf16.mxu0 0
    %443 = vmatpush2.bf16.msra.mxu0 0
    %444 = vmatprep.subr.bf16.mxu0 0
    %445 = vmatpush2.bf16.msra.mxu0 0
    %446 = vmatprep.subr.bf16.mxu0 0
    %447 = vmatpush2.bf16.msra.mxu0 0
    %448 = vmatprep.subr.bf16.mxu0 0
    %449 = vmatpush2.bf16.msra.mxu0 0
    %450 = vmatprep.subr.bf16.mxu0 0
    %451 = vmatpush2.bf16.msra.mxu0 0
    %452 = vmatprep.subr.bf16.mxu0 0
    %453 = vmatpush2.bf16.msra.mxu0 0
    %454 = vmatprep.subr.bf16.mxu0 0
    %455 = vmatpush2.bf16.msra.mxu0 0
    %456 = vmatprep.subr.bf16.mxu0 0
    %457 = vmatpush2.bf16.msra.mxu0 0
    %458 = vmatprep.mubr.bf16.mxu0 0
    %459 = vmatmul.mubr.bf16.gmra.mxu0 %v409
    %v460 = vpop.f32.mrf.mxu0
    %v461 = vadd.f32 %v257, %v460
    %v462 = vpop.f32.mrf.mxu0
    %v463 = vadd.f32 %v259, %v462
    %v464 = vpop.f32.mrf.mxu0
    %v465 = vadd.f32 %v261, %v464
    %v466 = vpop.f32.mrf.mxu0
    %v467 = vadd.f32 %v263, %v466
    %468 = vmatprep.mubr.bf16.mxu0 0
    %469 = vmatmul.mubr.bf16.gmra.mxu0 %v412
    %v470 = vpop.f32.mrf.mxu0
    %v471 = vadd.f32 %v267, %v470
    %v472 = vpop.f32.mrf.mxu0
    %v473 = vadd.f32 %v269, %v472
    %v474 = vpop.f32.mrf.mxu0
    %v475 = vadd.f32 %v271, %v474
    %v476 = vpop.f32.mrf.mxu0
    %v477 = vadd.f32 %v273, %v476
    %478 = vdwg.mxu0
    %479 = vmatprep.subr.bf16.mxu0 0
    %480 = vmatpush1.bf16.msra.mxu0 0
    %481 = vmatprep.subr.bf16.mxu0 0
    %482 = vmatpush1.bf16.msra.mxu0 0
    %483 = vmatprep.subr.bf16.mxu0 0
    %484 = vmatpush1.bf16.msra.mxu0 0
    %485 = vmatprep.subr.bf16.mxu0 0
    %486 = vmatpush1.bf16.msra.mxu0 0
    %487 = vmatprep.subr.bf16.mxu0 %v424
    %488 = vmatpush1.bf16.msra.mxu0 %v421
    %489 = vmatprep.subr.bf16.mxu0 %v391
    %490 = vmatpush1.bf16.msra.mxu0 %v390
    %491 = vmatprep.subr.bf16.mxu0 %v387
    %492 = vmatpush1.bf16.msra.mxu0 %v386
    %493 = vmatprep.subr.bf16.mxu0 %v383
    %494 = vmatpush1.bf16.msra.mxu0 %v382
    %495 = vmatprep.subr.bf16.mxu0 0
    %496 = vmatpush2.bf16.msra.mxu0 0
    %497 = vmatprep.subr.bf16.mxu0 0
    %498 = vmatpush2.bf16.msra.mxu0 0
    %499 = vmatprep.subr.bf16.mxu0 0
    %500 = vmatpush2.bf16.msra.mxu0 0
    %501 = vmatprep.subr.bf16.mxu0 0
    %502 = vmatpush2.bf16.msra.mxu0 0
    %503 = vmatprep.subr.bf16.mxu0 0
    %504 = vmatpush2.bf16.msra.mxu0 0
    %505 = vmatprep.subr.bf16.mxu0 0
    %506 = vmatpush2.bf16.msra.mxu0 0
    %507 = vmatprep.subr.bf16.mxu0 0
    %508 = vmatpush2.bf16.msra.mxu0 0
    %509 = vmatprep.subr.bf16.mxu0 0
    %510 = vmatpush2.bf16.msra.mxu0 0
    %511 = vmatprep.mubr.bf16.mxu0 0
    %512 = vmatmul.mubr.bf16.gmra.mxu0 %v409
    %v513 = vpop.f32.mrf.mxu0
    %v514 = vadd.f32 %v310, %v513
    %v515 = vpop.f32.mrf.mxu0
    %v516 = vadd.f32 %v312, %v515
    %v517 = vpop.f32.mrf.mxu0
    %v518 = vadd.f32 %v314, %v517
    %v519 = vpop.f32.mrf.mxu0
    %v520 = vadd.f32 %v316, %v519
    %521 = vmatprep.mubr.bf16.mxu0 0
    %522 = vmatmul.mubr.bf16.gmra.mxu0 %v412
    %v523 = vpop.f32.mrf.mxu0
    %v524 = vadd.f32 %v320, %v523
    %v525 = vpop.f32.mrf.mxu0
    %v526 = vadd.f32 %v322, %v525
    %v527 = vpop.f32.mrf.mxu0
    %v528 = vadd.f32 %v324, %v527
    %v529 = vpop.f32.mrf.mxu0
    %v530 = vadd.f32 %v326, %v529
    %531 = vdwg.mxu0
    %vm534 = vcmask 1042432
    %vm535 = vcmask 1046532
    %vm536 = vmor %vm534, %vm535
    %v537 = vrot.slane %v40, 5
    %v538 = vrot.slane %v537, 4
    %v539 = vrot.slane %v41, 5
    %v540 = vsel %vm536, %v538, %v539
    %v541 = vrot.slane %v539, 4
    %v542 = vrot.slane %v42, 5
    %v543 = vsel %vm536, %v541, %v542
    %v544 = vrot.slane %v43, 5
    %v545 = vrot.slane %v544, 4
    %v546 = vrot.slane %v44, 5
    %v547 = vsel %vm536, %v545, %v546
    %v548 = vrot.slane %v546, 4
    %v549 = vrot.slane %v45, 5
    %v550 = vsel %vm536, %v548, %v549
    %s551 = scalar_lea.vmem %s1, 224
    %v552 = vld [vmem:[%s551] sm:$0xff]
    %v553 = vld [vmem:[%s551 + $0x8] sm:$0xff]
    %v554 = vld [vmem:[%s551 + $0x10] sm:$0xff]
    %v555 = vld [vmem:[%s551 + $0x18] sm:$0xff]
    %v556 = vld [vmem:[%s551 + $0x20] sm:$0xff]
    %v557 = vld [vmem:[%s551 + $0x28] sm:$0xff]
    %v558 = vld [vmem:[%s551 + $0x30] sm:$0xff]
    %v559 = vld [vmem:[%s551 + $0x38] sm:$0xff]
    %v560 = vld [vmem:[%s551 + $0x40] sm:$0xff]
    %v561 = vld [vmem:[%s551 + $0x48] sm:$0xff]
    %v562 = vld [vmem:[%s551 + $0x50] sm:$0xff]
    %v563 = vld [vmem:[%s551 + $0x58] sm:$0xff]
    %v564 = vld [vmem:[%s551 + $0x60] sm:$0x77]
    %v565 = vld [vmem:[%s551 + $0x68] sm:$0x77]
    %v566 = vunpack.c.l.b16 %v540
    %v567 = vunpack.c.l.b16 %v543
    %v568 = vunpack.c.l.b16 %v547
    %v569 = vunpack.c.l.b16 %v550
    %v570 = vpack.c.b16 %v567, %v566
    %v571 = vpack.c.b16 %v569, %v568
    %v586 = vunpack.c.l.b16 %v552
    %v587 = vunpack.c.h.b16 %v552
    %v588 = vunpack.c.l.b16 %v553
    %v589 = vunpack.c.h.b16 %v553
    %v590 = vunpack.c.l.b16 %v554
    %v591 = vunpack.c.h.b16 %v554
    %v592 = vunpack.c.l.b16 %v555
    %v593 = vunpack.c.h.b16 %v555
    %v594 = vunpack.c.l.b16 %v556
    %v595 = vunpack.c.h.b16 %v556
    %v596 = vunpack.c.l.b16 %v557
    %v597 = vunpack.c.h.b16 %v557
    %v598 = vunpack.c.l.b16 %v558
    %v599 = vunpack.c.h.b16 %v558
    %v600 = vunpack.c.l.b16 %v559
    %v601 = vunpack.c.h.b16 %v559
    %v602 = vunpack.c.l.b16 %v560
    %v603 = vunpack.c.h.b16 %v560
    %v604 = vunpack.c.l.b16 %v561
    %v605 = vunpack.c.h.b16 %v561
    %v606 = vunpack.c.l.b16 %v562
    %v607 = vunpack.c.h.b16 %v562
    %v608 = vunpack.c.l.b16 %v563
    %v609 = vunpack.c.h.b16 %v563
    %v610 = vunpack.c.l.b16 %v564
    %v611 = vunpack.c.h.b16 %v564
    %v612 = vunpack.c.l.b16 %v565
    %v613 = vunpack.c.h.b16 %v565
    %v614 = vpack.c.b16 %v590, %v586
    %v615 = vpack.c.b16 %v591, %v587
    %v616 = vpack.c.b16 %v592, %v588
    %v617 = vpack.c.b16 %v593, %v589
    %v618 = vpack.c.b16 %v598, %v594
    %v619 = vpack.c.b16 %v599, %v595
    %v620 = vpack.c.b16 %v600, %v596
    %v621 = vpack.c.b16 %v601, %v597
    %v622 = vpack.c.b16 %v606, %v602
    %v623 = vpack.c.b16 %v607, %v603
    %v624 = vpack.c.b16 %v608, %v604
    %v625 = vpack.c.b16 %v609, %v605
    %v626 = vpack.c.b16 %v610, %v610
    %v627 = vpack.c.b16 %v611, %v611
    %v628 = vpack.c.b16 %v612, %v612
    %v629 = vpack.c.b16 %v613, %v613
    %v643 = vsel %vm202, %v570, 0
    %v646 = vsel %vm202, %v571, 0
    %v649 = vsel %vm209, %v626, 0
    %v652 = vsel %vm209, %v627, 0
    %v655 = vsel %vm209, %v628, 0
    %v658 = vsel %vm209, %v629, 0
    %660 = vmatprep.subr.bf16.mxu0 0
    %661 = vmatpush1.bf16.msra.mxu0 0
    %662 = vmatprep.subr.bf16.mxu0 0
    %663 = vmatpush1.bf16.msra.mxu0 0
    %664 = vmatprep.subr.bf16.mxu0 0
    %665 = vmatpush1.bf16.msra.mxu0 0
    %666 = vmatprep.subr.bf16.mxu0 0
    %667 = vmatpush1.bf16.msra.mxu0 0
    %668 = vmatprep.subr.bf16.mxu0 %v652
    %669 = vmatpush1.bf16.msra.mxu0 %v649
    %670 = vmatprep.subr.bf16.mxu0 %v623
    %671 = vmatpush1.bf16.msra.mxu0 %v622
    %672 = vmatprep.subr.bf16.mxu0 %v619
    %673 = vmatpush1.bf16.msra.mxu0 %v618
    %674 = vmatprep.subr.bf16.mxu0 %v615
    %675 = vmatpush1.bf16.msra.mxu0 %v614
    %676 = vmatprep.subr.bf16.mxu0 0
    %677 = vmatpush2.bf16.msra.mxu0 0
    %678 = vmatprep.subr.bf16.mxu0 0
    %679 = vmatpush2.bf16.msra.mxu0 0
    %680 = vmatprep.subr.bf16.mxu0 0
    %681 = vmatpush2.bf16.msra.mxu0 0
    %682 = vmatprep.subr.bf16.mxu0 0
    %683 = vmatpush2.bf16.msra.mxu0 0
    %684 = vmatprep.subr.bf16.mxu0 0
    %685 = vmatpush2.bf16.msra.mxu0 0
    %686 = vmatprep.subr.bf16.mxu0 0
    %687 = vmatpush2.bf16.msra.mxu0 0
    %688 = vmatprep.subr.bf16.mxu0 0
    %689 = vmatpush2.bf16.msra.mxu0 0
    %690 = vmatprep.subr.bf16.mxu0 0
    %691 = vmatpush2.bf16.msra.mxu0 0
    %692 = vmatprep.mubr.bf16.mxu0 0
    %693 = vmatmul.mubr.bf16.gmra.mxu0 %v643
    %v694 = vpop.f32.mrf.mxu0
    %v695 = vadd.f32 0.0, %v694
    %v696 = vpop.f32.mrf.mxu0
    %v697 = vadd.f32 0.0, %v696
    %v698 = vpop.f32.mrf.mxu0
    %v699 = vadd.f32 0.0, %v698
    %v700 = vpop.f32.mrf.mxu0
    %v701 = vadd.f32 0.0, %v700
    %702 = vmatprep.mubr.bf16.mxu0 0
    %703 = vmatmul.mubr.bf16.gmra.mxu0 %v646
    %v704 = vpop.f32.mrf.mxu0
    %v705 = vadd.f32 0.0, %v704
    %v706 = vpop.f32.mrf.mxu0
    %v707 = vadd.f32 0.0, %v706
    %v708 = vpop.f32.mrf.mxu0
    %v709 = vadd.f32 0.0, %v708
    %v710 = vpop.f32.mrf.mxu0
    %v711 = vadd.f32 0.0, %v710
    %712 = vdwg.mxu0
    %713 = vmatprep.subr.bf16.mxu0 0
    %714 = vmatpush1.bf16.msra.mxu0 0
    %715 = vmatprep.subr.bf16.mxu0 0
    %716 = vmatpush1.bf16.msra.mxu0 0
    %717 = vmatprep.subr.bf16.mxu0 0
    %718 = vmatpush1.bf16.msra.mxu0 0
    %719 = vmatprep.subr.bf16.mxu0 0
    %720 = vmatpush1.bf16.msra.mxu0 0
    %721 = vmatprep.subr.bf16.mxu0 %v658
    %722 = vmatpush1.bf16.msra.mxu0 %v655
    %723 = vmatprep.subr.bf16.mxu0 %v625
    %724 = vmatpush1.bf16.msra.mxu0 %v624
    %725 = vmatprep.subr.bf16.mxu0 %v621
    %726 = vmatpush1.bf16.msra.mxu0 %v620
    %727 = vmatprep.subr.bf16.mxu0 %v617
    %728 = vmatpush1.bf16.msra.mxu0 %v616
    %729 = vmatprep.subr.bf16.mxu0 0
    %730 = vmatpush2.bf16.msra.mxu0 0
    %731 = vmatprep.subr.bf16.mxu0 0
    %732 = vmatpush2.bf16.msra.mxu0 0
    %733 = vmatprep.subr.bf16.mxu0 0
    %734 = vmatpush2.bf16.msra.mxu0 0
    %735 = vmatprep.subr.bf16.mxu0 0
    %736 = vmatpush2.bf16.msra.mxu0 0
    %737 = vmatprep.subr.bf16.mxu0 0
    %738 = vmatpush2.bf16.msra.mxu0 0
    %739 = vmatprep.subr.bf16.mxu0 0
    %740 = vmatpush2.bf16.msra.mxu0 0
    %741 = vmatprep.subr.bf16.mxu0 0
    %742 = vmatpush2.bf16.msra.mxu0 0
    %743 = vmatprep.subr.bf16.mxu0 0
    %744 = vmatpush2.bf16.msra.mxu0 0
    %745 = vmatprep.mubr.bf16.mxu0 0
    %746 = vmatmul.mubr.bf16.gmra.mxu0 %v643
    %v747 = vpop.f32.mrf.mxu0
    %v748 = vadd.f32 0.0, %v747
    %v749 = vpop.f32.mrf.mxu0
    %v750 = vadd.f32 0.0, %v749
    %v751 = vpop.f32.mrf.mxu0
    %v752 = vadd.f32 0.0, %v751
    %v753 = vpop.f32.mrf.mxu0
    %v754 = vadd.f32 0.0, %v753
    %755 = vmatprep.mubr.bf16.mxu0 0
    %756 = vmatmul.mubr.bf16.gmra.mxu0 %v646
    %v757 = vpop.f32.mrf.mxu0
    %v758 = vadd.f32 0.0, %v757
    %v759 = vpop.f32.mrf.mxu0
    %v760 = vadd.f32 0.0, %v759
    %v761 = vpop.f32.mrf.mxu0
    %v762 = vadd.f32 0.0, %v761
    %v763 = vpop.f32.mrf.mxu0
    %v764 = vadd.f32 0.0, %v763
    %765 = vdwg.mxu0
    %v766 = vadd.f32 %v461, %v695
    %v767 = vadd.f32 %v463, %v697
    %v768 = vadd.f32 %v514, %v748
    %v769 = vadd.f32 %v516, %v750
    %v770 = vadd.f32 %v465, %v699
    %v771 = vadd.f32 %v467, %v701
    %v772 = vadd.f32 %v518, %v752
    %v773 = vadd.f32 %v520, %v754
    %v774 = vadd.f32 %v471, %v705
    %v775 = vadd.f32 %v473, %v707
    %v776 = vadd.f32 %v524, %v758
    %v777 = vadd.f32 %v526, %v760
    %v778 = vadd.f32 %v475, %v709
    %v779 = vadd.f32 %v477, %v711
    %v780 = vadd.f32 %v528, %v762
    %v781 = vadd.f32 %v530, %v764
    %v782 = vld [vmem:[%s2] sm:$0xf]
    %v784 = vlaneseq
    %v785 = vshrl.u32 %v784, 7
    %v786 = vsub.s32 0, %v785
    %v787 = vrot.slane %v782, %v786
    %v788 = vlaneseq
    %v789 = vshrl.u32 %v788, 7
    %v790 = vsub.s32 1, %v789
    %v791 = vrot.slane %v782, %v790
    %v792 = vlaneseq
    %v793 = vshrl.u32 %v792, 7
    %v794 = vsub.s32 2, %v793
    %v795 = vrot.slane %v782, %v794
    %v796 = vlaneseq
    %v797 = vshrl.u32 %v796, 7
    %v798 = vsub.s32 3, %v797
    %v799 = vrot.slane %v782, %v798
    %v804 = vadd.f32 %v766, %v787
    %v805 = vadd.f32 %v767, %v791
    %v806 = vadd.f32 %v768, %v795
    %v807 = vadd.f32 %v769, %v799
    %v808 = vadd.f32 %v770, %v787
    %v809 = vadd.f32 %v771, %v791
    %v810 = vadd.f32 %v772, %v795
    %v811 = vadd.f32 %v773, %v799
    %v812 = vadd.f32 %v774, %v787
    %v813 = vadd.f32 %v775, %v791
    %v814 = vadd.f32 %v776, %v795
    %v815 = vadd.f32 %v777, %v799
    %v816 = vadd.f32 %v778, %v787
    %v817 = vadd.f32 %v779, %v791
    %v818 = vadd.f32 %v780, %v795
    %v819 = vadd.f32 %v781, %v799
    %v820 = vmax.f32 %v804, 0.0
    %v821 = vmax.f32 %v805, 0.0
    %v822 = vmax.f32 %v806, 0.0
    %v823 = vmax.f32 %v807, 0.0
    %v824 = vmax.f32 %v808, 0.0
    %v825 = vmax.f32 %v809, 0.0
    %v826 = vmax.f32 %v810, 0.0
    %v827 = vmax.f32 %v811, 0.0
    %v828 = vmax.f32 %v812, 0.0
    %v829 = vmax.f32 %v813, 0.0
    %v830 = vmax.f32 %v814, 0.0
    %v831 = vmax.f32 %v815, 0.0
    %v832 = vmax.f32 %v816, 0.0
    %v833 = vmax.f32 %v817, 0.0
    %v834 = vmax.f32 %v818, 0.0
    %v835 = vmax.f32 %v819, 0.0
    %v836 = vadd.f32 %v820, %v824
    %v837 = vrot.slane %v836, 4
    %v838 = vadd.f32 %v836, %v837
    %v839 = vrot.slane %v838, 2
    %v840 = vadd.f32 %v838, %v839
    %v841 = vrot.slane %v840, 1
    %v842 = vadd.f32 %v840, %v841
    %v843 = vadd.f32 %v821, %v825
    %v844 = vrot.slane %v843, 4
    %v845 = vadd.f32 %v843, %v844
    %v846 = vrot.slane %v845, 2
    %v847 = vadd.f32 %v845, %v846
    %v848 = vrot.slane %v847, 1
    %v849 = vadd.f32 %v847, %v848
    %v850 = vadd.f32 %v822, %v826
    %v851 = vrot.slane %v850, 4
    %v852 = vadd.f32 %v850, %v851
    %v853 = vrot.slane %v852, 2
    %v854 = vadd.f32 %v852, %v853
    %v855 = vrot.slane %v854, 1
    %v856 = vadd.f32 %v854, %v855
    %v857 = vadd.f32 %v823, %v827
    %v858 = vrot.slane %v857, 4
    %v859 = vadd.f32 %v857, %v858
    %v860 = vrot.slane %v859, 2
    %v861 = vadd.f32 %v859, %v860
    %v862 = vrot.slane %v861, 1
    %v863 = vadd.f32 %v861, %v862
    %v864 = vadd.f32 %v828, %v832
    %v865 = vrot.slane %v864, 4
    %v866 = vadd.f32 %v864, %v865
    %v867 = vrot.slane %v866, 2
    %v868 = vadd.f32 %v866, %v867
    %v869 = vrot.slane %v868, 1
    %v870 = vadd.f32 %v868, %v869
    %v871 = vadd.f32 %v829, %v833
    %v872 = vrot.slane %v871, 4
    %v873 = vadd.f32 %v871, %v872
    %v874 = vrot.slane %v873, 2
    %v875 = vadd.f32 %v873, %v874
    %v876 = vrot.slane %v875, 1
    %v877 = vadd.f32 %v875, %v876
    %v878 = vadd.f32 %v830, %v834
    %v879 = vrot.slane %v878, 4
    %v880 = vadd.f32 %v878, %v879
    %v881 = vrot.slane %v880, 2
    %v882 = vadd.f32 %v880, %v881
    %v883 = vrot.slane %v882, 1
    %v884 = vadd.f32 %v882, %v883
    %v885 = vadd.f32 %v831, %v835
    %v886 = vrot.slane %v885, 4
    %v887 = vadd.f32 %v885, %v886
    %v888 = vrot.slane %v887, 2
    %v889 = vadd.f32 %v887, %v888
    %v890 = vrot.slane %v889, 1
    %v891 = vadd.f32 %v889, %v890
    %v892 = vld [vmem:[%s3] sm:$0x3]
    %v893 = vld [vmem:[%s4] sm:$0xff]
    %v894 = vld [vmem:[%s4 + $0x8] sm:$0xff]
    %v895 = vld [vmem:[%s4 + $0x10] sm:$0xff]
    %v896 = vld [vmem:[%s4 + $0x18] sm:$0xff]
    %v897 = vld [vmem:[%s5] sm:$0x1]
    %v899 = vlaneseq
    %v900 = vshrl.u32 %v899, 7
    %v901 = vsub.s32 0, %v900
    %v902 = vrot.slane %v897, %v901
    %vm904 = vcmask 261120
    %v906 = vsel %vm904, %v892, 0
    %908 = vmatprep.subr.mxu0 0.0
    %909 = vmatpush1.msra.mxu0 0.0
    %910 = vmatprep.subr.mxu0 0.0
    %911 = vmatpush1.msra.mxu0 0.0
    %912 = vmatprep.subr.mxu0 0.0
    %913 = vmatpush1.msra.mxu0 0.0
    %914 = vmatprep.subr.mxu0 0.0
    %915 = vmatpush1.msra.mxu0 0.0
    %916 = vmatprep.subr.mxu0 0.0
    %917 = vmatpush1.msra.mxu0 0.0
    %918 = vmatprep.subr.mxu0 0.0
    %919 = vmatpush1.msra.mxu0 0.0
    %920 = vmatprep.subr.mxu0 0.0
    %921 = vmatpush1.msra.mxu0 0.0
    %922 = vmatprep.subr.mxu0 0.0
    %923 = vmatpush1.msra.mxu0 0.0
    %924 = vmatprep.subr.mxu0 0.0
    %925 = vmatpush1.msra.mxu0 0.0
    %926 = vmatprep.subr.mxu0 0.0
    %927 = vmatpush1.msra.mxu0 0.0
    %928 = vmatprep.subr.mxu0 0.0
    %929 = vmatpush1.msra.mxu0 0.0
    %930 = vmatprep.subr.mxu0 0.0
    %931 = vmatpush1.msra.mxu0 0.0
    %932 = vmatprep.subr.mxu0 0.0
    %933 = vmatpush1.msra.mxu0 %v896
    %934 = vmatprep.subr.mxu0 0.0
    %935 = vmatpush1.msra.mxu0 %v895
    %936 = vmatprep.subr.mxu0 0.0
    %937 = vmatpush1.msra.mxu0 %v894
    %938 = vmatprep.subr.mxu0 0.0
    %939 = vmatpush1.msra.mxu0 %v893
    %940 = vmatprep.subr.mxu0 0.0
    %941 = vmatpush2.msra.mxu0 0.0
    %942 = vmatprep.subr.mxu0 0.0
    %943 = vmatpush2.msra.mxu0 0.0
    %944 = vmatprep.subr.mxu0 0.0
    %945 = vmatpush2.msra.mxu0 0.0
    %946 = vmatprep.subr.mxu0 0.0
    %947 = vmatpush2.msra.mxu0 0.0
    %948 = vmatprep.subr.mxu0 0.0
    %949 = vmatpush2.msra.mxu0 0.0
    %950 = vmatprep.subr.mxu0 0.0
    %951 = vmatpush2.msra.mxu0 0.0
    %952 = vmatprep.subr.mxu0 0.0
    %953 = vmatpush2.msra.mxu0 0.0
    %954 = vmatprep.subr.mxu0 0.0
    %955 = vmatpush2.msra.mxu0 0.0
    %956 = vmatprep.subr.mxu0 0.0
    %957 = vmatpush2.msra.mxu0 0.0
    %958 = vmatprep.subr.mxu0 0.0
    %959 = vmatpush2.msra.mxu0 0.0
    %960 = vmatprep.subr.mxu0 0.0
    %961 = vmatpush2.msra.mxu0 0.0
    %962 = vmatprep.subr.mxu0 0.0
    %963 = vmatpush2.msra.mxu0 0.0
    %964 = vmatprep.subr.mxu0 0.0
    %965 = vmatpush2.msra.mxu0 0.0
    %966 = vmatprep.subr.mxu0 0.0
    %967 = vmatpush2.msra.mxu0 0.0
    %968 = vmatprep.subr.mxu0 0.0
    %969 = vmatpush2.msra.mxu0 0.0
    %970 = vmatprep.subr.mxu0 0.0
    %971 = vmatpush2.msra.mxu0 0.0
    %972 = vmatprep.mubr.f32.mxu0 0.0
    %973 = vmatmul.mubr.f32.gmra.mxu0 %v906
    %v974 = vpop.f32.mrf.mxu0
    %v975 = vadd.f32 %v902, %v974
    %v976 = vpop.f32.mrf.mxu0
    %977 = vdwg.mxu0
    %v978 = vmax.f32 %v975, 0.0
    %v979 = vld [vmem:[%s6] sm:$0xff]
    %v980 = vld [vmem:[%s6 + $0x8] sm:$0xff]
    %v981 = vld [vmem:[%s6 + $0x10] sm:$0xff]
    %v982 = vld [vmem:[%s6 + $0x18] sm:$0xff]
    %v983 = vld [vmem:[%s7] sm:$0x1]
    %v985 = vlaneseq
    %v986 = vshrl.u32 %v985, 7
    %v987 = vsub.s32 0, %v986
    %v988 = vrot.slane %v983, %v987
    %v991 = vsel %vm904, %v978, 0
    %993 = vmatprep.subr.mxu0 0.0
    %994 = vmatpush1.msra.mxu0 0.0
    %995 = vmatprep.subr.mxu0 0.0
    %996 = vmatpush1.msra.mxu0 0.0
    %997 = vmatprep.subr.mxu0 0.0
    %998 = vmatpush1.msra.mxu0 0.0
    %999 = vmatprep.subr.mxu0 0.0
    %1000 = vmatpush1.msra.mxu0 0.0
    %1001 = vmatprep.subr.mxu0 0.0
    %1002 = vmatpush1.msra.mxu0 0.0
    %1003 = vmatprep.subr.mxu0 0.0
    %1004 = vmatpush1.msra.mxu0 0.0
    %1005 = vmatprep.subr.mxu0 0.0
    %1006 = vmatpush1.msra.mxu0 0.0
    %1007 = vmatprep.subr.mxu0 0.0
    %1008 = vmatpush1.msra.mxu0 0.0
    %1009 = vmatprep.subr.mxu0 0.0
    %1010 = vmatpush1.msra.mxu0 0.0
    %1011 = vmatprep.subr.mxu0 0.0
    %1012 = vmatpush1.msra.mxu0 0.0
    %1013 = vmatprep.subr.mxu0 0.0
    %1014 = vmatpush1.msra.mxu0 0.0
    %1015 = vmatprep.subr.mxu0 0.0
    %1016 = vmatpush1.msra.mxu0 0.0
    %1017 = vmatprep.subr.mxu0 0.0
    %1018 = vmatpush1.msra.mxu0 %v982
    %1019 = vmatprep.subr.mxu0 0.0
    %1020 = vmatpush1.msra.mxu0 %v981
    %1021 = vmatprep.subr.mxu0 0.0
    %1022 = vmatpush1.msra.mxu0 %v980
    %1023 = vmatprep.subr.mxu0 0.0
    %1024 = vmatpush1.msra.mxu0 %v979
    %1025 = vmatprep.subr.mxu0 0.0
    %1026 = vmatpush2.msra.mxu0 0.0
    %1027 = vmatprep.subr.mxu0 0.0
    %1028 = vmatpush2.msra.mxu0 0.0
    %1029 = vmatprep.subr.mxu0 0.0
    %1030 = vmatpush2.msra.mxu0 0.0
    %1031 = vmatprep.subr.mxu0 0.0
    %1032 = vmatpush2.msra.mxu0 0.0
    %1033 = vmatprep.subr.mxu0 0.0
    %1034 = vmatpush2.msra.mxu0 0.0
    %1035 = vmatprep.subr.mxu0 0.0
    %1036 = vmatpush2.msra.mxu0 0.0
    %1037 = vmatprep.subr.mxu0 0.0
    %1038 = vmatpush2.msra.mxu0 0.0
    %1039 = vmatprep.subr.mxu0 0.0
    %1040 = vmatpush2.msra.mxu0 0.0
    %1041 = vmatprep.subr.mxu0 0.0
    %1042 = vmatpush2.msra.mxu0 0.0
    %1043 = vmatprep.subr.mxu0 0.0
    %1044 = vmatpush2.msra.mxu0 0.0
    %1045 = vmatprep.subr.mxu0 0.0
    %1046 = vmatpush2.msra.mxu0 0.0
    %1047 = vmatprep.subr.mxu0 0.0
    %1048 = vmatpush2.msra.mxu0 0.0
    %1049 = vmatprep.subr.mxu0 0.0
    %1050 = vmatpush2.msra.mxu0 0.0
    %1051 = vmatprep.subr.mxu0 0.0
    %1052 = vmatpush2.msra.mxu0 0.0
    %1053 = vmatprep.subr.mxu0 0.0
    %1054 = vmatpush2.msra.mxu0 0.0
    %1055 = vmatprep.subr.mxu0 0.0
    %1056 = vmatpush2.msra.mxu0 0.0
    %1057 = vmatprep.mubr.f32.mxu0 0.0
    %1058 = vmatmul.mubr.f32.gmra.mxu0 %v991
    %v1059 = vpop.f32.mrf.mxu0
    %v1060 = vadd.f32 %v988, %v1059
    %v1061 = vpop.f32.mrf.mxu0
    %1062 = vdwg.mxu0
    %v1063 = vld [vmem:[%s8] sm:$0xff]
    %v1064 = vld [vmem:[%s8 + $0x8] sm:$0xff]
    %v1065 = vld [vmem:[%s8 + $0x10] sm:$0xff]
    %v1066 = vld [vmem:[%s8 + $0x18] sm:$0xff]
    %v1067 = vld [vmem:[%s8 + $0x20] sm:$0xff]
    %v1068 = vld [vmem:[%s8 + $0x28] sm:$0xff]
    %v1069 = vld [vmem:[%s8 + $0x30] sm:$0xff]
    %v1070 = vld [vmem:[%s8 + $0x38] sm:$0xff]
    %v1071 = vld [vmem:[%s8 + $0x40] sm:$0xff]
    %v1072 = vld [vmem:[%s8 + $0x48] sm:$0xff]
    %v1073 = vld [vmem:[%s8 + $0x50] sm:$0xff]
    %v1074 = vld [vmem:[%s8 + $0x58] sm:$0xff]
    %v1075 = vld [vmem:[%s8 + $0x60] sm:$0xff]
    %v1076 = vld [vmem:[%s8 + $0x68] sm:$0xff]
    %v1077 = vld [vmem:[%s8 + $0x70] sm:$0xff]
    %v1078 = vld [vmem:[%s8 + $0x78] sm:$0xff]
    %v1079 = vld [vmem:[%s8 + $0x80] sm:$0xff]
    %v1080 = vld [vmem:[%s8 + $0x88] sm:$0xff]
    %v1081 = vld [vmem:[%s8 + $0x90] sm:$0xff]
    %v1082 = vld [vmem:[%s8 + $0x98] sm:$0xff]
    %v1083 = vld [vmem:[%s8 + $0xa0] sm:$0xff]
    %v1084 = vld [vmem:[%s8 + $0xa8] sm:$0xff]
    %v1085 = vld [vmem:[%s8 + $0xb0] sm:$0xff]
    %v1086 = vld [vmem:[%s8 + $0xb8] sm:$0xff]
    %v1087 = vld [vmem:[%s8 + $0xc0] sm:$0xff]
    %v1088 = vld [vmem:[%s8 + $0xc8] sm:$0xff]
    %v1089 = vld [vmem:[%s8 + $0xd0] sm:$0xff]
    %v1090 = vld [vmem:[%s8 + $0xd8] sm:$0xff]
    %v1091 = vld [vmem:[%s8 + $0xe0] sm:$0xff]
    %v1092 = vld [vmem:[%s8 + $0xe8] sm:$0xff]
    %v1093 = vld [vmem:[%s8 + $0xf0] sm:$0xff]
    %v1094 = vld [vmem:[%s8 + $0xf8] sm:$0xff]
    %v1095 = vld [vmem:[%s8 + $0x100] sm:$0xff]
    %v1096 = vld [vmem:[%s8 + $0x108] sm:$0xff]
    %v1097 = vld [vmem:[%s8 + $0x110] sm:$0xff]
    %v1098 = vld [vmem:[%s8 + $0x118] sm:$0xff]
    %v1099 = vld [vmem:[%s8 + $0x120] sm:$0xff]
    %v1100 = vld [vmem:[%s8 + $0x128] sm:$0xff]
    %v1101 = vld [vmem:[%s8 + $0x130] sm:$0xff]
    %v1102 = vld [vmem:[%s8 + $0x138] sm:$0xff]
    %v1103 = vld [vmem:[%s8 + $0x140] sm:$0xff]
    %v1104 = vld [vmem:[%s8 + $0x148] sm:$0xff]
    %v1105 = vld [vmem:[%s8 + $0x150] sm:$0xff]
    %v1106 = vld [vmem:[%s8 + $0x158] sm:$0xff]
    %v1107 = vld [vmem:[%s8 + $0x160] sm:$0xff]
    %v1108 = vld [vmem:[%s8 + $0x168] sm:$0xff]
    %v1109 = vld [vmem:[%s8 + $0x170] sm:$0xff]
    %v1110 = vld [vmem:[%s8 + $0x178] sm:$0xff]
    %v1111 = vld [vmem:[%s8 + $0x180] sm:$0xff]
    %v1112 = vld [vmem:[%s8 + $0x188] sm:$0xff]
    %v1113 = vld [vmem:[%s8 + $0x190] sm:$0xff]
    %v1114 = vld [vmem:[%s8 + $0x198] sm:$0xff]
    %v1115 = vld [vmem:[%s8 + $0x1a0] sm:$0xff]
    %v1116 = vld [vmem:[%s8 + $0x1a8] sm:$0xff]
    %v1117 = vld [vmem:[%s8 + $0x1b0] sm:$0xff]
    %v1118 = vld [vmem:[%s8 + $0x1b8] sm:$0xff]
    %v1119 = vld [vmem:[%s8 + $0x1c0] sm:$0xff]
    %v1120 = vld [vmem:[%s8 + $0x1c8] sm:$0xff]
    %v1121 = vld [vmem:[%s8 + $0x1d0] sm:$0xff]
    %v1122 = vld [vmem:[%s8 + $0x1d8] sm:$0xff]
    %v1123 = vld [vmem:[%s8 + $0x1e0] sm:$0xff]
    %v1124 = vld [vmem:[%s8 + $0x1e8] sm:$0xff]
    %v1125 = vld [vmem:[%s8 + $0x1f0] sm:$0xff]
    %v1126 = vld [vmem:[%s8 + $0x1f8] sm:$0xff]
    %v1127 = vld [vmem:[%s9] sm:$0xff]
    %v1128 = vld [vmem:[%s9 + $0x8] sm:$0xff]
    %v1129 = vld [vmem:[%s9 + $0x10] sm:$0xff]
    %v1130 = vld [vmem:[%s9 + $0x18] sm:$0xff]
    %v1132 = vsel %vm904, %v1060, 0
    %1134 = vmatprep.subr.mxu0 0.0
    %1135 = vmatpush1.msra.mxu0 0.0
    %1136 = vmatprep.subr.mxu0 0.0
    %1137 = vmatpush1.msra.mxu0 0.0
    %1138 = vmatprep.subr.mxu0 0.0
    %1139 = vmatpush1.msra.mxu0 0.0
    %1140 = vmatprep.subr.mxu0 0.0
    %1141 = vmatpush1.msra.mxu0 0.0
    %1142 = vmatprep.subr.mxu0 0.0
    %1143 = vmatpush1.msra.mxu0 0.0
    %1144 = vmatprep.subr.mxu0 0.0
    %1145 = vmatpush1.msra.mxu0 0.0
    %1146 = vmatprep.subr.mxu0 0.0
    %1147 = vmatpush1.msra.mxu0 0.0
    %1148 = vmatprep.subr.mxu0 0.0
    %1149 = vmatpush1.msra.mxu0 0.0
    %1150 = vmatprep.subr.mxu0 0.0
    %1151 = vmatpush1.msra.mxu0 0.0
    %1152 = vmatprep.subr.mxu0 0.0
    %1153 = vmatpush1.msra.mxu0 0.0
    %1154 = vmatprep.subr.mxu0 0.0
    %1155 = vmatpush1.msra.mxu0 0.0
    %1156 = vmatprep.subr.mxu0 0.0
    %1157 = vmatpush1.msra.mxu0 0.0
    %1158 = vmatprep.subr.mxu0 0.0
    %1159 = vmatpush1.msra.mxu0 %v1130
    %1160 = vmatprep.subr.mxu0 0.0
    %1161 = vmatpush1.msra.mxu0 %v1129
    %1162 = vmatprep.subr.mxu0 0.0
    %1163 = vmatpush1.msra.mxu0 %v1128
    %1164 = vmatprep.subr.mxu0 0.0
    %1165 = vmatpush1.msra.mxu0 %v1127
    %1166 = vmatprep.subr.mxu0 0.0
    %1167 = vmatpush2.msra.mxu0 0.0
    %1168 = vmatprep.subr.mxu0 0.0
    %1169 = vmatpush2.msra.mxu0 0.0
    %1170 = vmatprep.subr.mxu0 0.0
    %1171 = vmatpush2.msra.mxu0 0.0
    %1172 = vmatprep.subr.mxu0 0.0
    %1173 = vmatpush2.msra.mxu0 0.0
    %1174 = vmatprep.subr.mxu0 0.0
    %1175 = vmatpush2.msra.mxu0 0.0
    %1176 = vmatprep.subr.mxu0 0.0
    %1177 = vmatpush2.msra.mxu0 0.0
    %1178 = vmatprep.subr.mxu0 0.0
    %1179 = vmatpush2.msra.mxu0 0.0
    %1180 = vmatprep.subr.mxu0 0.0
    %1181 = vmatpush2.msra.mxu0 0.0
    %1182 = vmatprep.subr.mxu0 0.0
    %1183 = vmatpush2.msra.mxu0 0.0
    %1184 = vmatprep.subr.mxu0 0.0
    %1185 = vmatpush2.msra.mxu0 0.0
    %1186 = vmatprep.subr.mxu0 0.0
    %1187 = vmatpush2.msra.mxu0 0.0
    %1188 = vmatprep.subr.mxu0 0.0
    %1189 = vmatpush2.msra.mxu0 0.0
    %1190 = vmatprep.subr.mxu0 0.0
    %1191 = vmatpush2.msra.mxu0 0.0
    %1192 = vmatprep.subr.mxu0 0.0
    %1193 = vmatpush2.msra.mxu0 0.0
    %1194 = vmatprep.subr.mxu0 0.0
    %1195 = vmatpush2.msra.mxu0 0.0
    %1196 = vmatprep.subr.mxu0 0.0
    %1197 = vmatpush2.msra.mxu0 0.0
    %1198 = vmatprep.mubr.f32.mxu0 0.0
    %1199 = vmatmul.mubr.f32.gmra.mxu0 %v1132
    %v1200 = vpop.f32.mrf.mxu0
    %v1201 = vadd.f32 0.0, %v1200
    %v1202 = vpop.f32.mrf.mxu0
    %1203 = vdwg.mxu0
    %vm1212 = vcmask 1041409
    %v1213 = vsel %vm1212, %v870, %v842
    %v1214 = vsel %vm1212, %v877, %v849
    %v1215 = vsel %vm1212, %v884, %v856
    %v1216 = vsel %vm1212, %v891, %v863
    %1221 = vmatprep.subr.mxu0 0.0
    %1222 = vmatpush1.msra.mxu0 %v1078
    %1223 = vmatprep.subr.mxu0 0.0
    %1224 = vmatpush1.msra.mxu0 %v1077
    %1225 = vmatprep.subr.mxu0 0.0
    %1226 = vmatpush1.msra.mxu0 %v1076
    %1227 = vmatprep.subr.mxu0 0.0
    %1228 = vmatpush1.msra.mxu0 %v1075
    %1229 = vmatprep.subr.mxu0 0.0
    %1230 = vmatpush1.msra.mxu0 %v1074
    %1231 = vmatprep.subr.mxu0 0.0
    %1232 = vmatpush1.msra.mxu0 %v1073
    %1233 = vmatprep.subr.mxu0 0.0
    %1234 = vmatpush1.msra.mxu0 %v1072
    %1235 = vmatprep.subr.mxu0 0.0
    %1236 = vmatpush1.msra.mxu0 %v1071
    %1237 = vmatprep.subr.mxu0 0.0
    %1238 = vmatpush1.msra.mxu0 %v1070
    %1239 = vmatprep.subr.mxu0 0.0
    %1240 = vmatpush1.msra.mxu0 %v1069
    %1241 = vmatprep.subr.mxu0 0.0
    %1242 = vmatpush1.msra.mxu0 %v1068
    %1243 = vmatprep.subr.mxu0 0.0
    %1244 = vmatpush1.msra.mxu0 %v1067
    %1245 = vmatprep.subr.mxu0 0.0
    %1246 = vmatpush1.msra.mxu0 %v1066
    %1247 = vmatprep.subr.mxu0 0.0
    %1248 = vmatpush1.msra.mxu0 %v1065
    %1249 = vmatprep.subr.mxu0 0.0
    %1250 = vmatpush1.msra.mxu0 %v1064
    %1251 = vmatprep.subr.mxu0 0.0
    %1252 = vmatpush1.msra.mxu0 %v1063
    %1253 = vmatprep.subr.mxu0 0.0
    %1254 = vmatpush2.msra.mxu0 %v1094
    %1255 = vmatprep.subr.mxu0 0.0
    %1256 = vmatpush2.msra.mxu0 %v1093
    %1257 = vmatprep.subr.mxu0 0.0
    %1258 = vmatpush2.msra.mxu0 %v1092
    %1259 = vmatprep.subr.mxu0 0.0
    %1260 = vmatpush2.msra.mxu0 %v1091
    %1261 = vmatprep.subr.mxu0 0.0
    %1262 = vmatpush2.msra.mxu0 %v1090
    %1263 = vmatprep.subr.mxu0 0.0
    %1264 = vmatpush2.msra.mxu0 %v1089
    %1265 = vmatprep.subr.mxu0 0.0
    %1266 = vmatpush2.msra.mxu0 %v1088
    %1267 = vmatprep.subr.mxu0 0.0
    %1268 = vmatpush2.msra.mxu0 %v1087
    %1269 = vmatprep.subr.mxu0 0.0
    %1270 = vmatpush2.msra.mxu0 %v1086
    %1271 = vmatprep.subr.mxu0 0.0
    %1272 = vmatpush2.msra.mxu0 %v1085
    %1273 = vmatprep.subr.mxu0 0.0
    %1274 = vmatpush2.msra.mxu0 %v1084
    %1275 = vmatprep.subr.mxu0 0.0
    %1276 = vmatpush2.msra.mxu0 %v1083
    %1277 = vmatprep.subr.mxu0 0.0
    %1278 = vmatpush2.msra.mxu0 %v1082
    %1279 = vmatprep.subr.mxu0 0.0
    %1280 = vmatpush2.msra.mxu0 %v1081
    %1281 = vmatprep.subr.mxu0 0.0
    %1282 = vmatpush2.msra.mxu0 %v1080
    %1283 = vmatprep.subr.mxu0 0.0
    %1284 = vmatpush2.msra.mxu0 %v1079
    %1285 = vmatprep.mubr.f32.mxu0 %v1214
    %1286 = vmatmul.mubr.f32.gmra.mxu0 %v1213
    %v1287 = vpop.f32.mrf.mxu0
    %v1288 = vadd.f32 %v1201, %v1287
    %v1289 = vpop.f32.mrf.mxu0
    %1290 = vdwg.mxu0
    %1291 = vmatprep.subr.mxu0 0.0
    %1292 = vmatpush1.msra.mxu0 %v1110
    %1293 = vmatprep.subr.mxu0 0.0
    %1294 = vmatpush1.msra.mxu0 %v1109
    %1295 = vmatprep.subr.mxu0 0.0
    %1296 = vmatpush1.msra.mxu0 %v1108
    %1297 = vmatprep.subr.mxu0 0.0
    %1298 = vmatpush1.msra.mxu0 %v1107
    %1299 = vmatprep.subr.mxu0 0.0
    %1300 = vmatpush1.msra.mxu0 %v1106
    %1301 = vmatprep.subr.mxu0 0.0
    %1302 = vmatpush1.msra.mxu0 %v1105
    %1303 = vmatprep.subr.mxu0 0.0
    %1304 = vmatpush1.msra.mxu0 %v1104
    %1305 = vmatprep.subr.mxu0 0.0
    %1306 = vmatpush1.msra.mxu0 %v1103
    %1307 = vmatprep.subr.mxu0 0.0
    %1308 = vmatpush1.msra.mxu0 %v1102
    %1309 = vmatprep.subr.mxu0 0.0
    %1310 = vmatpush1.msra.mxu0 %v1101
    %1311 = vmatprep.subr.mxu0 0.0
    %1312 = vmatpush1.msra.mxu0 %v1100
    %1313 = vmatprep.subr.mxu0 0.0
    %1314 = vmatpush1.msra.mxu0 %v1099
    %1315 = vmatprep.subr.mxu0 0.0
    %1316 = vmatpush1.msra.mxu0 %v1098
    %1317 = vmatprep.subr.mxu0 0.0
    %1318 = vmatpush1.msra.mxu0 %v1097
    %1319 = vmatprep.subr.mxu0 0.0
    %1320 = vmatpush1.msra.mxu0 %v1096
    %1321 = vmatprep.subr.mxu0 0.0
    %1322 = vmatpush1.msra.mxu0 %v1095
    %1323 = vmatprep.subr.mxu0 0.0
    %1324 = vmatpush2.msra.mxu0 %v1126
    %1325 = vmatprep.subr.mxu0 0.0
    %1326 = vmatpush2.msra.mxu0 %v1125
    %1327 = vmatprep.subr.mxu0 0.0
    %1328 = vmatpush2.msra.mxu0 %v1124
    %1329 = vmatprep.subr.mxu0 0.0
    %1330 = vmatpush2.msra.mxu0 %v1123
    %1331 = vmatprep.subr.mxu0 0.0
    %1332 = vmatpush2.msra.mxu0 %v1122
    %1333 = vmatprep.subr.mxu0 0.0
    %1334 = vmatpush2.msra.mxu0 %v1121
    %1335 = vmatprep.subr.mxu0 0.0
    %1336 = vmatpush2.msra.mxu0 %v1120
    %1337 = vmatprep.subr.mxu0 0.0
    %1338 = vmatpush2.msra.mxu0 %v1119
    %1339 = vmatprep.subr.mxu0 0.0
    %1340 = vmatpush2.msra.mxu0 %v1118
    %1341 = vmatprep.subr.mxu0 0.0
    %1342 = vmatpush2.msra.mxu0 %v1117
    %1343 = vmatprep.subr.mxu0 0.0
    %1344 = vmatpush2.msra.mxu0 %v1116
    %1345 = vmatprep.subr.mxu0 0.0
    %1346 = vmatpush2.msra.mxu0 %v1115
    %1347 = vmatprep.subr.mxu0 0.0
    %1348 = vmatpush2.msra.mxu0 %v1114
    %1349 = vmatprep.subr.mxu0 0.0
    %1350 = vmatpush2.msra.mxu0 %v1113
    %1351 = vmatprep.subr.mxu0 0.0
    %1352 = vmatpush2.msra.mxu0 %v1112
    %1353 = vmatprep.subr.mxu0 0.0
    %1354 = vmatpush2.msra.mxu0 %v1111
    %1355 = vmatprep.mubr.f32.mxu0 %v1216
    %1356 = vmatmul.mubr.f32.gmra.mxu0 %v1215
    %v1357 = vpop.f32.mrf.mxu0
    %v1358 = vadd.f32 %v1288, %v1357
    %v1359 = vpop.f32.mrf.mxu0
    %1360 = vdwg.mxu0
    %v1361 = vld [vmem:[%s10] sm:$0x1]
    %v1363 = vlaneseq
    %v1364 = vshrl.u32 %v1363, 7
    %v1365 = vsub.s32 0, %v1364
    %v1366 = vrot.slane %v1361, %v1365
    %v1368 = vadd.f32 %v1358, %v1366
    %1369 = vst [vmem:[#allocation2] sm:$0x3] %v1368
    // Predicated region
    $region46: #{avc_wrapper_cam_forward.1} parent=1 // pred_check
      _
    $region47: #{avc_wrapper_cam_forward.1} parent=1 // pred_check_branch
      %1371 = sbr.rel (0) target = $region49
    $region48: #{avc_wrapper_cam_forward.1} parent=1 // pred_region
      %s1373 = ssub.s32 32, 32
      %1374 = vsyncadd [#allocation3], %s1373
      %s1376 = sshll.u32 [#allocation2], 4
      %s1377 = int_to_ptr.vmem [resolvable:$true] %s1376
      %1379 = dma.vmem_to_hbm [thread:$0]  %s1377, 32, %s11, [#allocation3]
    $region49: #{avc_wrapper_cam_forward.1} parent=1 // pred_fallthru
      _
    // Predicated region
    $region50: #{avc_wrapper_cam_forward.1} parent=1 // pred_check
      _
    $region51: #{avc_wrapper_cam_forward.1} parent=1 // pred_check_branch
      %1381 = sbr.rel (0) target = $region53
    $region52: #{avc_wrapper_cam_forward.1} parent=1 // pred_region
      %1382 = dma.done [#allocation3], 32
    $region53: #{avc_wrapper_cam_forward.1} parent=1 // pred_fallthru
      _
    %1383 = vsyncpa [#allocation3], 1

</llo_original>
